<compile_context>
chip_gen: v6e
topology: v6e:2x2x1
jax: 0.10.0
libtpu: 0.0.40
codegen_flags: <defaults>
</compile_context>

<pallas_src>
import functools
import math

import jax
import jax.numpy as jnp
from jax.experimental import pallas as pl
from jax.experimental.pallas import tpu as pltpu


# --------------------------- per-chip tile budgets ---------------------------
def _query_vmem_bytes():
    try:
        return int(pltpu.get_tpu_info().vmem_capacity_bytes)
    except Exception:  # interpret mode / API drift -> conservative default
        return 64 * 1024 * 1024


_VMEM_BYTES = _query_vmem_bytes()
_BIG_VMEM = _VMEM_BYTES >= (96 << 20)           # v5e / v6e: 128 MiB; v7x: 64 MiB

_LIN_TM, _LIN_TN, _LIN_TK = (512, 1024, 512) if _BIG_VMEM else (256, 512, 512)
_MLP_TM, _MLP_TF = (256, 512) if _BIG_VMEM else (128, 512)
_LN_TM = 256
_ATTN_TQ, _ATTN_TK = 128, 512                    # self-attn (flash) q / k tiles
_CROSS_TQ = 128 if _BIG_VMEM else 64             # cross-attn q tile (full Sk resident)
_VMEM_LIMIT = 48 * 1024 * 1024                   # < v7x 64 MiB physical, >> v5e 16 MiB default


def _round_up(x, m):
    return (x + m - 1) // m * m


def _pick_tile(dim, target, align):
    """Largest tile <= target that is a multiple of `align` and divides `dim`,
    falling back to the full dimension (always a legal Mosaic block)."""
    if dim <= target:
        return dim
    t = (target // align) * align
    while t >= align:
        if dim % t == 0:
            return t
        t -= align
    return dim


def _pad_rows(x2d, rows_padded):
    rows = x2d.shape[0]
    if rows_padded == rows:
        return x2d
    return jnp.pad(x2d, ((0, rows_padded - rows), (0, 0)))


# ----------------------------- LayerNorm kernel -----------------------------
def _layernorm_kernel(x_ref, w_ref, b_ref, o_ref, *, eps):
    x = x_ref[...].astype(jnp.float32)
    mean = jnp.mean(x, axis=-1, keepdims=True)
    var = jnp.mean(jnp.square(x - mean), axis=-1, keepdims=True)
    y = (x - mean) * jax.lax.rsqrt(var + eps)
    o_ref[...] = (y * w_ref[...].astype(jnp.float32)
                  + b_ref[...].astype(jnp.float32)).astype(o_ref.dtype)


def layernorm(x, w, b, eps=1e-5, out_dtype=jnp.bfloat16):
    """LayerNorm over the last dim.  Emits bf16 so downstream projections read
    half the activation bytes and never re-cast inside their kernels."""
    B, S, D = x.shape
    M = B * S
    tm = min(_LN_TM, _round_up(M, 8))
    Mp = _round_up(M, tm)
    x2 = _pad_rows(x.reshape(M, D), Mp)
    out = pl.pallas_call(
        functools.partial(_layernorm_kernel, eps=eps),
        grid=(Mp // tm,),
        in_specs=[
            pl.BlockSpec((tm, D), lambda i: (i, 0)),
            pl.BlockSpec((1, D), lambda i: (0, 0)),
            pl.BlockSpec((1, D), lambda i: (0, 0)),
        ],
        out_specs=pl.BlockSpec((tm, D), lambda i: (i, 0)),
        out_shape=jax.ShapeDtypeStruct((Mp, D), out_dtype),
        compiler_params=pltpu.CompilerParams(
            dimension_semantics=("parallel",),
            vmem_limit_bytes=_VMEM_LIMIT),
    )(x2, w.reshape(1, D), b.reshape(1, D))
    if Mp != M:
        out = out[:M]
    return out.reshape(B, S, D)


# ------------------------------- Linear kernel -------------------------------
def _linear_kernel(*refs, has_bias, has_residual, acc_in_out):
    x_ref, w_ref = refs[0], refs[1]
    idx = 2
    b_ref = r_ref = None
    if has_bias:
        b_ref = refs[idx]; idx += 1
    if has_residual:
        r_ref = refs[idx]; idx += 1
    o_ref = refs[idx]; idx += 1
    acc_ref = None if acc_in_out else refs[idx]

    k = pl.program_id(2)

    x = x_ref[...]
    if x.dtype != jnp.bfloat16:           # static (trace-time) check; no cost for bf16 inputs
        x = x.astype(jnp.bfloat16)
    w = w_ref[...]
    if w.dtype != jnp.bfloat16:
        w = w.astype(jnp.bfloat16)
    part = jnp.dot(x, w, preferred_element_type=jnp.float32)

    if acc_in_out:
        # f32 output block is resident across the k axis -> accumulate in place.
        @pl.when(k == 0)
        def _():
            init = jnp.zeros(o_ref.shape, jnp.float32)
            if has_bias:
                init = init + b_ref[...].astype(jnp.float32)
            if has_residual:
                init = init + r_ref[...].astype(jnp.float32)
            o_ref[...] = init

        o_ref[...] += part
    else:
        @pl.when(k == 0)
        def _():
            acc_ref[...] = jnp.zeros(acc_ref.shape, jnp.float32)

        acc_ref[...] += part

        @pl.when(k == pl.num_programs(2) - 1)
        def _():
            y = acc_ref[...]
            if has_bias:
                y = y + b_ref[...].astype(jnp.float32)
            if has_residual:
                y = y + r_ref[...].astype(jnp.float32)
            o_ref[...] = y.astype(o_ref.dtype)


def linear(x, w, b=None, residual=None, out_dtype=None):
    """y = x @ w (+ b) (+ residual), tiled over (rows, cols, K)."""
    B, S, Din = x.shape
    Dout = w.shape[1]
    if out_dtype is None:
        out_dtype = residual.dtype if residual is not None else x.dtype
    acc_in_out = jnp.dtype(out_dtype) == jnp.float32

    M = B * S
    tm = min(_LIN_TM, _round_up(M, 8))
    Mp = _round_up(M, tm)
    tn = _pick_tile(Dout, _LIN_TN, 128)
    tk = _pick_tile(Din, _LIN_TK, 128)

    x2 = _pad_rows(x.reshape(M, Din), Mp)
    inputs = [x2, w]
    in_specs = [
        pl.BlockSpec((tm, tk), lambda i, j, k: (i, k)),
        pl.BlockSpec((tk, tn), lambda i, j, k: (k, j)),
    ]
    if b is not None:
        inputs.append(b.reshape(1, Dout))
        in_specs.append(pl.BlockSpec((1, tn), lambda i, j, k: (0, j)))
    if residual is not None:
        inputs.append(_pad_rows(residual.reshape(M, Dout), Mp))
        in_specs.append(pl.BlockSpec((tm, tn), lambda i, j, k: (i, j)))

    scratch = [] if acc_in_out else [pltpu.VMEM((tm, tn), jnp.float32)]

    out = pl.pallas_call(
        functools.partial(_linear_kernel, has_bias=b is not None,
                          has_residual=residual is not None,
                          acc_in_out=acc_in_out),
        grid=(Mp // tm, Dout // tn, Din // tk),
        in_specs=in_specs,
        out_specs=pl.BlockSpec((tm, tn), lambda i, j, k: (i, j)),
        out_shape=jax.ShapeDtypeStruct((Mp, Dout), out_dtype),
        scratch_shapes=scratch,
        compiler_params=pltpu.CompilerParams(
            dimension_semantics=("parallel", "parallel", "arbitrary"),
            vmem_limit_bytes=_VMEM_LIMIT),
    )(*inputs)
    if Mp != M:
        out = out[:M]
    return out.reshape(B, S, Dout)


# --------------------------- attention layout helpers -------------------------
def _split_q_heads(q, kv_heads, n_rep, hd):
    """(B, S, Hq*hd) -> (B, Hkv, n_rep, S, hd): head selection becomes a
    major-dim block index; the n_rep q heads of each kv head are adjacent."""
    B, S, _ = q.shape
    return q.reshape(B, S, kv_heads, n_rep, hd).transpose(0, 2, 3, 1, 4)


def _split_kv_heads(x, kv_heads, hd):
    """(B, S, Hkv*hd) -> (B, Hkv, S, hd)."""
    B, S, _ = x.shape
    return x.reshape(B, S, kv_heads, hd).transpose(0, 2, 1, 3)


def _merge_heads(ctx5):
    """(B, Hkv, n_rep, S, hd) -> (B, S, D) with repeat_interleave head order."""
    B, Hkv, n_rep, S, hd = ctx5.shape
    return ctx5.transpose(0, 3, 1, 2, 4).reshape(B, S, Hkv * n_rep * hd)


# ------------------ self-attention: flash (online softmax) -------------------
def _flash_attention_kernel(q_ref, k_ref, v_ref, o_ref, m_ref, l_ref, acc_ref,
                            *, scale, causal, sq, sk):
    n_rep, tq, hd = q_ref.shape
    tk = k_ref.shape[0]
    qi = pl.program_id(2)
    ki = pl.program_id(3)

    @pl.when(ki == 0)
    def _():
        m_ref[...] = jnp.full(m_ref.shape, -jnp.inf, jnp.float32)
        l_ref[...] = jnp.zeros(l_ref.shape, jnp.float32)
        acc_ref[...] = jnp.zeros(acc_ref.shape, jnp.float32)

    # one batched QK^T for all n_rep query heads of this kv head (GQA)
    q = q_ref[...].reshape(n_rep * tq, hd)
    s = jax.lax.dot_general(q, k_ref[...], (((1,), (1,)), ((), ())),
                            preferred_element_type=jnp.float32) * scale

    if causal:
        neg = jnp.finfo(jnp.float32).min
        row = (jax.lax.broadcasted_iota(jnp.int32, (n_rep, tq, tk), 1)
               .reshape(n_rep * tq, tk) + qi * tq)
        col = jax.lax.broadcasted_iota(jnp.int32, (n_rep * tq, tk), 1) + ki * tk
        s = jnp.where(col > row + (sk - sq), neg, s)

    m_prev = m_ref[...]
    m_new = jnp.maximum(m_prev, jnp.max(s, axis=-1, keepdims=True))
    alpha = jnp.exp(m_prev - m_new)
    p = jnp.exp(s - m_new)
    l_ref[...] = alpha * l_ref[...] + jnp.sum(p, axis=-1, keepdims=True)
    acc_ref[...] = alpha * acc_ref[...] + jax.lax.dot_general(
        p.astype(jnp.bfloat16), v_ref[...], (((1,), (0,)), ((), ())),
        preferred_element_type=jnp.float32)
    m_ref[...] = m_new

    @pl.when(ki == pl.num_programs(3) - 1)
    def _():
        ctx = acc_ref[...] * pl.reciprocal(l_ref[...], approx=True)
        o_ref[...] = ctx.reshape(n_rep, tq, hd).astype(o_ref.dtype)


def flash_self_attention(q5, k4, v4, *, causal=True):
    """Causal self-attention, grid (B, Hkv, q_blocks, k_blocks), online softmax.
    Scores are linear in Sk; the probability tensor is never materialized."""
    B, Hkv, n_rep, Sq, hd = q5.shape
    Sk = k4.shape[2]
    tq = _pick_tile(Sq, _ATTN_TQ, 8)
    tk = _pick_tile(Sk, _ATTN_TK, 128)
    causal = bool(causal) and Sq != 1
    scale = 1.0 / math.sqrt(hd)

    kernel = functools.partial(_flash_attention_kernel, scale=scale,
                               causal=causal, sq=Sq, sk=Sk)
    ctx5 = pl.pallas_call(
        kernel,
        grid=(B, Hkv, Sq // tq, Sk // tk),
        in_specs=[
            pl.BlockSpec((None, None, n_rep, tq, hd), lambda b, h, i, j: (b, h, 0, i, 0)),
            pl.BlockSpec((None, None, tk, hd), lambda b, h, i, j: (b, h, j, 0)),
            pl.BlockSpec((None, None, tk, hd), lambda b, h, i, j: (b, h, j, 0)),
        ],
        out_specs=pl.BlockSpec((None, None, n_rep, tq, hd),
                               lambda b, h, i, j: (b, h, 0, i, 0)),
        out_shape=jax.ShapeDtypeStruct((B, Hkv, n_rep, Sq, hd), q5.dtype),
        scratch_shapes=[
            pltpu.VMEM((n_rep * tq, 1), jnp.float32),   # running max
            pltpu.VMEM((n_rep * tq, 1), jnp.float32),   # running denom
            pltpu.VMEM((n_rep * tq, hd), jnp.float32),  # context accumulator
        ],
        compiler_params=pltpu.CompilerParams(
            dimension_semantics=("parallel", "parallel", "parallel", "arbitrary"),
            vmem_limit_bytes=_VMEM_LIMIT),
    )(q5, k4, v4)
    return ctx5


# --------------- cross-attention: full-Sk softmax, returns weights ------------
def _cross_attention_kernel(q_ref, k_ref, v_ref, o_ref, w_ref, *, scale):
    n_rep, tq, hd = q_ref.shape
    sk = k_ref.shape[0]

    q = q_ref[...].reshape(n_rep * tq, hd)
    s = jax.lax.dot_general(q, k_ref[...], (((1,), (1,)), ((), ())),
                            preferred_element_type=jnp.float32) * scale
    s = s - jnp.max(s, axis=-1, keepdims=True)
    p = jnp.exp(s)
    p = p / jnp.sum(p, axis=-1, keepdims=True)   # exact: these weights are returned
    w_ref[...] = p.reshape(n_rep, tq, sk).astype(w_ref.dtype)
    ctx = jax.lax.dot_general(p.astype(jnp.bfloat16), v_ref[...],
                              (((1,), (0,)), ((), ())),
                              preferred_element_type=jnp.float32)
    o_ref[...] = ctx.reshape(n_rep, tq, hd).astype(o_ref.dtype)


def cross_attention_with_weights(q5, k4, v4):
    """Non-causal attention, grid (B, Hkv, q_blocks), full Sk resident (the
    returned probability tensor forces full-row softmax anyway).
    TODO(synk): weights are emitted in f32 to match torch softmax dtype; bf16
                would halve the dominant HBM write stream if allowed."""
    B, Hkv, n_rep, Sq, hd = q5.shape
    Sk = k4.shape[2]
    tq = _pick_tile(Sq, _CROSS_TQ, 8)
    scale = 1.0 / math.sqrt(hd)

    kernel = functools.partial(_cross_attention_kernel, scale=scale)
    ctx5, w5 = pl.pallas_call(
        kernel,
        grid=(B, Hkv, Sq // tq),
        in_specs=[
            pl.BlockSpec((None, None, n_rep, tq, hd), lambda b, h, i: (b, h, 0, i, 0)),
            pl.BlockSpec((None, None, Sk, hd), lambda b, h, i: (b, h, 0, 0)),
            pl.BlockSpec((None, None, Sk, hd), lambda b, h, i: (b, h, 0, 0)),
        ],
        out_specs=[
            pl.BlockSpec((None, None, n_rep, tq, hd), lambda b, h, i: (b, h, 0, i, 0)),
            pl.BlockSpec((None, None, n_rep, tq, Sk), lambda b, h, i: (b, h, 0, i, 0)),
        ],
        out_shape=[
            jax.ShapeDtypeStruct((B, Hkv, n_rep, Sq, hd), q5.dtype),
            jax.ShapeDtypeStruct((B, Hkv, n_rep, Sq, Sk), jnp.float32),
        ],
        compiler_params=pltpu.CompilerParams(
            dimension_semantics=("parallel", "parallel", "parallel"),
            vmem_limit_bytes=_VMEM_LIMIT),
    )(q5, k4, v4)
    return ctx5, w5


# ------------------------------ LlamaMLP kernel ------------------------------
def _mlp_kernel(x_ref, wg_ref, wu_ref, wd_ref, r_ref, o_ref):
    j = pl.program_id(1)

    @pl.when(j == 0)
    def _():
        o_ref[...] = r_ref[...].astype(jnp.float32)   # residual folded into init

    x = x_ref[...]
    if x.dtype != jnp.bfloat16:
        x = x.astype(jnp.bfloat16)
    g = jnp.dot(x, wg_ref[...], preferred_element_type=jnp.float32)
    u = jnp.dot(x, wu_ref[...], preferred_element_type=jnp.float32)
    h = (g * jax.lax.logistic(g) * u).astype(jnp.bfloat16)       # SiLU(gate) * up
    o_ref[...] += jnp.dot(h, wd_ref[...], preferred_element_type=jnp.float32)


def llama_mlp(x, wg, wu, wd, residual):
    """residual + down(SiLU(gate(x)) * up(x)), tiled over (rows, ffn_dim);
    accumulates straight into the resident f32 output block."""
    B, S, D = x.shape
    F = wg.shape[1]
    M = B * S
    tm = min(_MLP_TM, _round_up(M, 8))
    Mp = _round_up(M, tm)
    tf = _pick_tile(F, _MLP_TF, 128)

    out = pl.pallas_call(
        _mlp_kernel,
        grid=(Mp // tm, F // tf),
        in_specs=[
            pl.BlockSpec((tm, D), lambda i, j: (i, 0)),   # x tile resident across j
            pl.BlockSpec((D, tf), lambda i, j: (0, j)),
            pl.BlockSpec((D, tf), lambda i, j: (0, j)),
            pl.BlockSpec((tf, D), lambda i, j: (j, 0)),
            pl.BlockSpec((tm, D), lambda i, j: (i, 0)),   # residual
        ],
        out_specs=pl.BlockSpec((tm, D), lambda i, j: (i, 0)),
        out_shape=jax.ShapeDtypeStruct((Mp, D), residual.dtype),
        compiler_params=pltpu.CompilerParams(
            dimension_semantics=("parallel", "arbitrary"),
            vmem_limit_bytes=_VMEM_LIMIT),
    )(_pad_rows(x.reshape(M, D), Mp), wg, wu, wd,
      _pad_rows(residual.reshape(M, D), Mp))
    if Mp != M:
        out = out[:M]
    return out.reshape(B, S, D)


# ------------------------- module-level composition --------------------------
def decoder_layer_forward(params, x, enc_outputs, q_n_heads, kv_n_heads):
    B, S, D = x.shape
    hd = D // q_n_heads
    n_rep = q_n_heads // kv_n_heads
    kv_dim = hd * kv_n_heads

    # ---- self-attention block (causal) ----
    sa = params["self_attn"]
    a = layernorm(x, params["norm1_w"], params["norm1_b"])          # bf16 out
    qkv = linear(a, sa["Wqkv"], sa["bqkv"])                         # fused Q|K|V, bf16 out
    q5 = _split_q_heads(qkv[..., :D], kv_n_heads, n_rep, hd)
    k4 = _split_kv_heads(qkv[..., D:D + kv_dim], kv_n_heads, hd)
    v4 = _split_kv_heads(qkv[..., D + kv_dim:], kv_n_heads, hd)
    ctx = _merge_heads(flash_self_attention(q5, k4, v4, causal=True))
    x = linear(ctx, sa["Wo"], sa["bo"], residual=x)                 # residual fused, f32 out

    # ---- cross-attention block ----
    ca = params["cross_attn"]
    a = layernorm(x, params["norm2_w"], params["norm2_b"])
    q = linear(a, ca["Wq"], ca["bq"])                               # bf16 out
    kv = linear(enc_outputs.astype(jnp.bfloat16), ca["Wkv"], ca["bkv"])   # fused K|V on encoder
    q5 = _split_q_heads(q, kv_n_heads, n_rep, hd)
    k4 = _split_kv_heads(kv[..., :kv_dim], kv_n_heads, hd)
    v4 = _split_kv_heads(kv[..., kv_dim:], kv_n_heads, hd)
    ctx5, w5 = cross_attention_with_weights(q5, k4, v4)
    attn_weights = w5.reshape(B, q_n_heads, S, w5.shape[-1])
    x = linear(_merge_heads(ctx5), ca["Wo"], ca["bo"], residual=x)

    # ---- feed-forward block ----
    m = layernorm(x, params["norm3_w"], params["norm3_b"])
    x = llama_mlp(m, params["ffn_gate"], params["ffn_up"], params["ffn_down"],
                  residual=x)
    return x, attn_weights


# ------------------------------ parameter init -------------------------------
def _init_linear(key, din, dout, bias=True):
    """nn.Linear-style init; weights are stored in bf16 once (halves weight DMA),
    biases stay f32 (added in the f32 epilogue)."""
    lim = 1.0 / math.sqrt(din)
    kw, kb = jax.random.split(key)
    w = jax.random.uniform(kw, (din, dout), jnp.float32, -lim, lim).astype(jnp.bfloat16)
    if not bias:
        return w
    b = jax.random.uniform(kb, (dout,), jnp.float32, -lim, lim)
    return w, b


def init_params(key, d_model, q_n_heads, kv_n_heads, ffn_dim):
    hd = d_model // q_n_heads
    kv_dim = hd * kv_n_heads
    keys = jax.random.split(key, 8)

    # Fused Q|K|V / K|V weights are mathematically identical to separate
    # Wq/Wk/Wv (all have fan_in = d_model, so the init distribution matches).
    wqkv, bqkv = _init_linear(keys[0], d_model, d_model + 2 * kv_dim)
    wo_s, bo_s = _init_linear(keys[1], d_model, d_model)
    wq_c, bq_c = _init_linear(keys[2], d_model, d_model)
    wkv_c, bkv_c = _init_linear(keys[3], d_model, 2 * kv_dim)
    wo_c, bo_c = _init_linear(keys[4], d_model, d_model)

    return dict(
        norm1_w=jnp.ones((d_model,), jnp.float32),
        norm1_b=jnp.zeros((d_model,), jnp.float32),
        norm2_w=jnp.ones((d_model,), jnp.float32),
        norm2_b=jnp.zeros((d_model,), jnp.float32),
        norm3_w=jnp.ones((d_model,), jnp.float32),
        norm3_b=jnp.zeros((d_model,), jnp.float32),
        self_attn=dict(Wqkv=wqkv, bqkv=bqkv, Wo=wo_s, bo=bo_s),
        cross_attn=dict(Wq=wq_c, bq=bq_c, Wkv=wkv_c, bkv=bkv_c, Wo=wo_c, bo=bo_c),
        ffn_gate=_init_linear(keys[5], d_model, ffn_dim, bias=False),
        ffn_up=_init_linear(keys[6], d_model, ffn_dim, bias=False),
        ffn_down=_init_linear(keys[7], ffn_dim, d_model, bias=False),
    )


if __name__ == "__main__":
    B, S, S_enc = 2, 8, 8
    d_model, q_n_heads, kv_n_heads, ffn_dim = 32, 4, 2, 64

    root = jax.random.PRNGKey(0)
    k_params, k_x, k_enc = jax.random.split(root, 3)
    params = init_params(k_params, d_model, q_n_heads, kv_n_heads, ffn_dim)

    x = jax.random.normal(k_x, (B, S, d_model), jnp.float32)
    enc_outputs = jax.random.normal(k_enc, (B, S_enc, d_model), jnp.float32)

    fwd = jax.jit(functools.partial(decoder_layer_forward,
                                    q_n_heads=q_n_heads, kv_n_heads=kv_n_heads))
    out, attn_w = fwd(params, x, enc_outputs)
    jax.block_until_ready((out, attn_w))

    assert out.shape == (B, S, d_model)
    assert attn_w.shape == (B, q_n_heads, S, S_enc)
    assert bool(jnp.all(jnp.isfinite(out)))
    assert bool(jnp.all(jnp.isfinite(attn_w)))
    print("KERNEL_OK")
</pallas_src>

<mosaic_0001>
module attributes {stable_mosaic.version = 11 : i64} {
  func.func @_linear_kernel(%arg0: i32, %arg1: i32, %arg2: i32, %arg3: memref<16x32xbf16, #tpu.memory_space<vmem>>, %arg4: memref<32x64xbf16, #tpu.memory_space<vmem>>, %arg5: memref<1x64xf32, #tpu.memory_space<vmem>>, %arg6: memref<16x64xbf16, #tpu.memory_space<vmem>>, %arg7: memref<16x64xf32, #tpu.memory_space<vmem>>) attributes {dimension_semantics = [#tpu.dimension_semantics<parallel>, #tpu.dimension_semantics<parallel>, #tpu.dimension_semantics<arbitrary>], iteration_bounds = array<i64: 1, 1, 1>, scalar_prefetch = 0 : i64, scratch_operands = 1 : i64, tpu.core_type = #tpu.core_type<tc>, window_params = [{transform_indices = @transform_0, window_bounds = array<i64: 16, 32>}, {transform_indices = @transform_1, window_bounds = array<i64: 32, 64>}, {transform_indices = @transform_2, window_bounds = array<i64: 1, 64>}, {transform_indices = @transform_3, window_bounds = array<i64: 16, 64>}]} {
    %c0 = arith.constant 0 : index
    %c0_0 = arith.constant 0 : index
    %0 = vector.load %arg3[%c0, %c0_0] : memref<16x32xbf16, #tpu.memory_space<vmem>>, vector<16x32xbf16>
    %c0_1 = arith.constant 0 : index
    %c0_2 = arith.constant 0 : index
    %1 = vector.load %arg4[%c0_1, %c0_2] : memref<32x64xbf16, #tpu.memory_space<vmem>>, vector<32x64xbf16>
    %cst = arith.constant dense<0.000000e+00> : vector<16x64xf32>
    %2 = tpu.matmul %0, %1, %cst {dimension_numbers = #tpu.dot_dimension_numbers<[1], [0], [0], [1], [0, 0, 1, 1], [], []>} : vector<16x32xbf16>, vector<32x64xbf16>, vector<16x64xf32> -> vector<16x64xf32>
    %c0_i32 = arith.constant 0 : i32
    %3 = arith.cmpi eq, %arg2, %c0_i32 : i32
    %4 = arith.extui %3 : i1 to i32
    %c0_i32_3 = arith.constant 0 : i32
    %5 = arith.cmpi ne, %4, %c0_i32_3 : i32
    scf.if %5 {
      %cst_10 = arith.constant 0.000000e+00 : f32
      %12 = vector.broadcast %cst_10 : f32 to vector<16x64xf32>
      %c0_11 = arith.constant 0 : index
      %c0_12 = arith.constant 0 : index
      %13 = vector.load %arg7[%c0_11, %c0_12] : memref<16x64xf32, #tpu.memory_space<vmem>>, vector<16x64xf32>
      tpu.vector_store %arg7[%c0_11, %c0_12], %12 {strides = array<i32>} : memref<16x64xf32, #tpu.memory_space<vmem>>, vector<16x64xf32>,
    } else {
    }
    %c0_4 = arith.constant 0 : index
    %c0_5 = arith.constant 0 : index
    %6 = vector.load %arg7[%c0_4, %c0_5] : memref<16x64xf32, #tpu.memory_space<vmem>>, vector<16x64xf32>
    %7 = arith.addf %6, %2 : vector<16x64xf32>
    %c0_6 = arith.constant 0 : index
    %c0_7 = arith.constant 0 : index
    %8 = vector.load %arg7[%c0_6, %c0_7] : memref<16x64xf32, #tpu.memory_space<vmem>>, vector<16x64xf32>
    tpu.vector_store %arg7[%c0_6, %c0_7], %7 {strides = array<i32>} : memref<16x64xf32, #tpu.memory_space<vmem>>, vector<16x64xf32>,
    %c0_i32_8 = arith.constant 0 : i32
    %9 = arith.cmpi eq, %arg2, %c0_i32_8 : i32
    %10 = arith.extui %9 : i1 to i32
    %c0_i32_9 = arith.constant 0 : i32
    %11 = arith.cmpi ne, %10, %c0_i32_9 : i32
    scf.if %11 {
      %c0_10 = arith.constant 0 : index
      %c0_11 = arith.constant 0 : index
      %12 = vector.load %arg7[%c0_10, %c0_11] : memref<16x64xf32, #tpu.memory_space<vmem>>, vector<16x64xf32>
      %c0_12 = arith.constant 0 : index
      %c0_13 = arith.constant 0 : index
      %13 = vector.load %arg5[%c0_12, %c0_13] : memref<1x64xf32, #tpu.memory_space<vmem>>, vector<1x64xf32>
      %14 = vector.broadcast %13 : vector<1x64xf32> to vector<16x64xf32>
      %15 = arith.addf %12, %14 : vector<16x64xf32>
      %16 = arith.truncf %15 : vector<16x64xf32> to vector<16x64xbf16>
      %c0_14 = arith.constant 0 : index
      %c0_15 = arith.constant 0 : index
      %17 = vector.load %arg6[%c0_14, %c0_15] : memref<16x64xbf16, #tpu.memory_space<vmem>>, vector<16x64xbf16>
      tpu.vector_store %arg6[%c0_14, %c0_15], %16 {strides = array<i32>} : memref<16x64xbf16, #tpu.memory_space<vmem>>, vector<16x64xbf16>,
    } else {
    }
    return
  }
  func.func @transform_0(%arg0: i32, %arg1: i32, %arg2: i32) -> (i32, i32) {
    %c0_i32 = arith.constant 0 : i32
    return %arg0, %arg2 : i32, i32
  }
  func.func @transform_1(%arg0: i32, %arg1: i32, %arg2: i32) -> (i32, i32) {
    %c0_i32 = arith.constant 0 : i32
    return %arg2, %arg1 : i32, i32
  }
  func.func @transform_2(%arg0: i32, %arg1: i32, %arg2: i32) -> (i32, i32) {
    %c0_i32 = arith.constant 0 : i32
    %c0_i32_0 = arith.constant 0 : i32
    return %c0_i32, %arg1 : i32, i32
  }
  func.func @transform_3(%arg0: i32, %arg1: i32, %arg2: i32) -> (i32, i32) {
    %c0_i32 = arith.constant 0 : i32
    return %arg0, %arg1 : i32, i32
  }
}

module attributes {stable_mosaic.version = 11 : i64} {
  func.func @_layernorm_kernel(%arg0: i32, %arg1: memref<16x32xf32, #tpu.memory_space<vmem>>, %arg2: memref<1x32xf32, #tpu.memory_space<vmem>>, %arg3: memref<1x32xf32, #tpu.memory_space<vmem>>, %arg4: memref<16x32xbf16, #tpu.memory_space<vmem>>) attributes {dimension_semantics = [#tpu.dimension_semantics<parallel>], iteration_bounds = array<i64: 1>, scalar_prefetch = 0 : i64, scratch_operands = 0 : i64, tpu.core_type = #tpu.core_type<tc>, window_params = [{transform_indices = @transform_0, window_bounds = array<i64: 16, 32>}, {pipeline_mode = #tpu.pipeline_mode<synchronous>, transform_indices = @transform_1, window_bounds = array<i64: 1, 32>}, {pipeline_mode = #tpu.pipeline_mode<synchronous>, transform_indices = @transform_2, window_bounds = array<i64: 1, 32>}, {transform_indices = @transform_3, window_bounds = array<i64: 16, 32>}]} {
    %c0 = arith.constant 0 : index
    %c0_0 = arith.constant 0 : index
    %0 = vector.load %arg1[%c0, %c0_0] : memref<16x32xf32, #tpu.memory_space<vmem>>, vector<16x32xf32>
    %cst = arith.constant dense<0.000000e+00> : vector<16xf32>
    %1 = vector.multi_reduction <add>, %0, %cst [1] : vector<16x32xf32> to vector<16xf32>
    %2 = vector.shape_cast %1 : vector<16xf32> to vector<16x1xf32>
    %cst_1 = arith.constant 3.200000e+01 : f32
    %3 = vector.broadcast %cst_1 : f32 to vector<16x1xf32>
    %4 = arith.divf %2, %3 : vector<16x1xf32>
    %5 = vector.broadcast %4 : vector<16x1xf32> to vector<16x32xf32>
    %6 = arith.subf %0, %5 : vector<16x32xf32>
    %7 = arith.mulf %6, %6 : vector<16x32xf32>
    %cst_2 = arith.constant dense<0.000000e+00> : vector<16xf32>
    %8 = vector.multi_reduction <add>, %7, %cst_2 [1] : vector<16x32xf32> to vector<16xf32>
    %9 = vector.shape_cast %8 : vector<16xf32> to vector<16x1xf32>
    %cst_3 = arith.constant 3.200000e+01 : f32
    %10 = vector.broadcast %cst_3 : f32 to vector<16x1xf32>
    %11 = arith.divf %9, %10 : vector<16x1xf32>
    %12 = vector.broadcast %4 : vector<16x1xf32> to vector<16x32xf32>
    %13 = arith.subf %0, %12 : vector<16x32xf32>
    %cst_4 = arith.constant 9.99999974E-6 : f32
    %14 = vector.broadcast %cst_4 : f32 to vector<16x1xf32>
    %15 = arith.addf %11, %14 : vector<16x1xf32>
    %16 = math.rsqrt %15 : vector<16x1xf32>
    %17 = vector.broadcast %16 : vector<16x1xf32> to vector<16x32xf32>
    %18 = arith.mulf %13, %17 : vector<16x32xf32>
    %c0_5 = arith.constant 0 : index
    %c0_6 = arith.constant 0 : index
    %19 = vector.load %arg2[%c0_5, %c0_6] : memref<1x32xf32, #tpu.memory_space<vmem>>, vector<1x32xf32>
    %20 = vector.broadcast %19 : vector<1x32xf32> to vector<16x32xf32>
    %21 = arith.mulf %18, %20 : vector<16x32xf32>
    %c0_7 = arith.constant 0 : index
    %c0_8 = arith.constant 0 : index
    %22 = vector.load %arg3[%c0_7, %c0_8] : memref<1x32xf32, #tpu.memory_space<vmem>>, vector<1x32xf32>
    %23 = vector.broadcast %22 : vector<1x32xf32> to vector<16x32xf32>
    %24 = arith.addf %21, %23 : vector<16x32xf32>
    %25 = arith.truncf %24 : vector<16x32xf32> to vector<16x32xbf16>
    %c0_9 = arith.constant 0 : index
    %c0_10 = arith.constant 0 : index
    %26 = vector.load %arg4[%c0_9, %c0_10] : memref<16x32xbf16, #tpu.memory_space<vmem>>, vector<16x32xbf16>
    tpu.vector_store %arg4[%c0_9, %c0_10], %25 {strides = array<i32>} : memref<16x32xbf16, #tpu.memory_space<vmem>>, vector<16x32xbf16>,
    return
  }
  func.func @transform_0(%arg0: i32) -> (i32, i32) {
    %c0_i32 = arith.constant 0 : i32
    %c0_i32_0 = arith.constant 0 : i32
    return %arg0, %c0_i32 : i32, i32
  }
  func.func @transform_1(%arg0: i32) -> (i32, i32) {
    %c0_i32 = arith.constant 0 : i32
    %c0_i32_0 = arith.constant 0 : i32
    %c0_i32_1 = arith.constant 0 : i32
    return %c0_i32, %c0_i32_0 : i32, i32
  }
  func.func @transform_2(%arg0: i32) -> (i32, i32) {
    %c0_i32 = arith.constant 0 : i32
    %c0_i32_0 = arith.constant 0 : i32
    %c0_i32_1 = arith.constant 0 : i32
    return %c0_i32, %c0_i32_0 : i32, i32
  }
  func.func @transform_3(%arg0: i32) -> (i32, i32) {
    %c0_i32 = arith.constant 0 : i32
    %c0_i32_0 = arith.constant 0 : i32
    return %arg0, %c0_i32 : i32, i32
  }
}

module attributes {stable_mosaic.version = 11 : i64} {
  func.func @_flash_attention_kernel(%arg0: i32, %arg1: i32, %arg2: i32, %arg3: i32, %arg4: memref<1x1x2x8x8xbf16, #tpu.memory_space<vmem>>, %arg5: memref<1x1x8x8xbf16, #tpu.memory_space<vmem>>, %arg6: memref<1x1x8x8xbf16, #tpu.memory_space<vmem>>, %arg7: memref<1x1x2x8x8xbf16, #tpu.memory_space<vmem>>, %arg8: memref<16x1xf32, #tpu.memory_space<vmem>>, %arg9: memref<16x1xf32, #tpu.memory_space<vmem>>, %arg10: memref<16x8xf32, #tpu.memory_space<vmem>>) attributes {dimension_semantics = [#tpu.dimension_semantics<parallel>, #tpu.dimension_semantics<parallel>, #tpu.dimension_semantics<parallel>, #tpu.dimension_semantics<arbitrary>], iteration_bounds = array<i64: 2, 2, 1, 1>, scalar_prefetch = 0 : i64, scratch_operands = 3 : i64, tpu.core_type = #tpu.core_type<tc>, window_params = [{transform_indices = @transform_0, window_bounds = array<i64: 1, 1, 2, 8, 8>}, {transform_indices = @transform_1, window_bounds = array<i64: 1, 1, 8, 8>}, {transform_indices = @transform_2, window_bounds = array<i64: 1, 1, 8, 8>}, {transform_indices = @transform_3, window_bounds = array<i64: 1, 1, 2, 8, 8>}]} {
    %c0_i32 = arith.constant 0 : i32
    %0 = arith.cmpi eq, %arg3, %c0_i32 : i32
    %1 = arith.extui %0 : i1 to i32
    %c0_i32_0 = arith.constant 0 : i32
    %2 = arith.cmpi ne, %1, %c0_i32_0 : i32
    scf.if %2 {
      %cst_34 = arith.constant 0xFF800000 : f32
      %53 = vector.broadcast %cst_34 : f32 to vector<16x1xf32>
      %c0_35 = arith.constant 0 : index
      %c0_36 = arith.constant 0 : index
      %54 = vector.load %arg8[%c0_35, %c0_36] : memref<16x1xf32, #tpu.memory_space<vmem>>, vector<16x1xf32>
      tpu.vector_store %arg8[%c0_35, %c0_36], %53 {strides = array<i32>} : memref<16x1xf32, #tpu.memory_space<vmem>>, vector<16x1xf32>,
      %cst_37 = arith.constant 0.000000e+00 : f32
      %55 = vector.broadcast %cst_37 : f32 to vector<16x1xf32>
      %c0_38 = arith.constant 0 : index
      %c0_39 = arith.constant 0 : index
      %56 = vector.load %arg9[%c0_38, %c0_39] : memref<16x1xf32, #tpu.memory_space<vmem>>, vector<16x1xf32>
      tpu.vector_store %arg9[%c0_38, %c0_39], %55 {strides = array<i32>} : memref<16x1xf32, #tpu.memory_space<vmem>>, vector<16x1xf32>,
      %cst_40 = arith.constant 0.000000e+00 : f32
      %57 = vector.broadcast %cst_40 : f32 to vector<16x8xf32>
      %c0_41 = arith.constant 0 : index
      %c0_42 = arith.constant 0 : index
      %58 = vector.load %arg10[%c0_41, %c0_42] : memref<16x8xf32, #tpu.memory_space<vmem>>, vector<16x8xf32>
      tpu.vector_store %arg10[%c0_41, %c0_42], %57 {strides = array<i32>} : memref<16x8xf32, #tpu.memory_space<vmem>>, vector<16x8xf32>,
    } else {
    }
    %c0 = arith.constant 0 : index
    %c0_1 = arith.constant 0 : index
    %c0_2 = arith.constant 0 : index
    %c0_3 = arith.constant 0 : index
    %c0_4 = arith.constant 0 : index
    %3 = vector.load %arg4[%c0, %c0_1, %c0_2, %c0_3, %c0_4] : memref<1x1x2x8x8xbf16, #tpu.memory_space<vmem>>, vector<1x1x2x8x8xbf16>
    %4 = vector.shape_cast %3 : vector<1x1x2x8x8xbf16> to vector<2x8x8xbf16>
    %5 = vector.shape_cast %4 : vector<2x8x8xbf16> to vector<16x8xbf16>
    %c0_5 = arith.constant 0 : index
    %c0_6 = arith.constant 0 : index
    %c0_7 = arith.constant 0 : index
    %c0_8 = arith.constant 0 : index
    %6 = vector.load %arg5[%c0_5, %c0_6, %c0_7, %c0_8] : memref<1x1x8x8xbf16, #tpu.memory_space<vmem>>, vector<1x1x8x8xbf16>
    %7 = vector.shape_cast %6 : vector<1x1x8x8xbf16> to vector<8x8xbf16>
    %cst = arith.constant dense<0.000000e+00> : vector<16x8xf32>
    %8 = tpu.matmul %5, %7, %cst {dimension_numbers = #tpu.dot_dimension_numbers<[1], [1], [0], [0], [0, 0, 1, 0], [], []>} : vector<16x8xbf16>, vector<8x8xbf16>, vector<16x8xf32> -> vector<16x8xf32>
    %cst_9 = arith.constant 0.353553385 : f32
    %9 = vector.broadcast %cst_9 : f32 to vector<16x8xf32>
    %10 = arith.mulf %8, %9 : vector<16x8xf32>
    %11 = tpu.iota {dimensions = array<i32: 1>} : vector<2x8x8xi32>
    %12 = vector.shape_cast %11 : vector<2x8x8xi32> to vector<16x8xi32>
    %c8_i32 = arith.constant 8 : i32
    %13 = arith.muli %arg2, %c8_i32 : i32
    %14 = vector.broadcast %13 : i32 to vector<16x8xi32>
    %15 = arith.addi %12, %14 : vector<16x8xi32>
    %16 = tpu.iota {dimensions = array<i32: 1>} : vector<16x8xi32>
    %c8_i32_10 = arith.constant 8 : i32
    %17 = arith.muli %arg3, %c8_i32_10 : i32
    %18 = vector.broadcast %17 : i32 to vector<16x8xi32>
    %19 = arith.addi %16, %18 : vector<16x8xi32>
    %c0_i32_11 = arith.constant 0 : i32
    %20 = vector.broadcast %c0_i32_11 : i32 to vector<16x8xi32>
    %21 = arith.addi %15, %20 : vector<16x8xi32>
    %22 = arith.cmpi sgt, %19, %21 : vector<16x8xi32>
    %cst_12 = arith.constant -3.40282347E+38 : f32
    %23 = vector.broadcast %cst_12 : f32 to vector<16x8xf32>
    %24 = arith.select %22, %23, %10 : vector<16x8xi1>, vector<16x8xf32>
    %c0_13 = arith.constant 0 : index
    %c0_14 = arith.constant 0 : index
    %25 = vector.load %arg8[%c0_13, %c0_14] : memref<16x1xf32, #tpu.memory_space<vmem>>, vector<16x1xf32>
    %cst_15 = arith.constant dense<0xFF800000> : vector<16xf32>
    %26 = vector.multi_reduction <maximumf>, %24, %cst_15 [1] : vector<16x8xf32> to vector<16xf32>
    %27 = vector.shape_cast %26 : vector<16xf32> to vector<16x1xf32>
    %28 = arith.maximumf %25, %27 : vector<16x1xf32>
    %29 = arith.subf %25, %28 : vector<16x1xf32>
    %30 = math.exp %29 : vector<16x1xf32>
    %31 = vector.broadcast %28 : vector<16x1xf32> to vector<16x8xf32>
    %32 = arith.subf %24, %31 : vector<16x8xf32>
    %33 = math.exp %32 : vector<16x8xf32>
    %c0_16 = arith.constant 0 : index
    %c0_17 = arith.constant 0 : index
    %34 = vector.load %arg9[%c0_16, %c0_17] : memref<16x1xf32, #tpu.memory_space<vmem>>, vector<16x1xf32>
    %35 = arith.mulf %30, %34 : vector<16x1xf32>
    %cst_18 = arith.constant dense<0.000000e+00> : vector<16xf32>
    %36 = vector.multi_reduction <add>, %33, %cst_18 [1] : vector<16x8xf32> to vector<16xf32>
    %37 = vector.shape_cast %36 : vector<16xf32> to vector<16x1xf32>
    %38 = arith.addf %35, %37 : vector<16x1xf32>
    %c0_19 = arith.constant 0 : index
    %c0_20 = arith.constant 0 : index
    %39 = vector.load %arg9[%c0_19, %c0_20] : memref<16x1xf32, #tpu.memory_space<vmem>>, vector<16x1xf32>
    tpu.vector_store %arg9[%c0_19, %c0_20], %38 {strides = array<i32>} : memref<16x1xf32, #tpu.memory_space<vmem>>, vector<16x1xf32>,
    %c0_21 = arith.constant 0 : index
    %c0_22 = arith.constant 0 : index
    %40 = vector.load %arg10[%c0_21, %c0_22] : memref<16x8xf32, #tpu.memory_space<vmem>>, vector<16x8xf32>
    %41 = vector.broadcast %30 : vector<16x1xf32> to vector<16x8xf32>
    %42 = arith.mulf %41, %40 : vector<16x8xf32>
    %43 = arith.truncf %33 : vector<16x8xf32> to vector<16x8xbf16>
    %c0_23 = arith.constant 0 : index
    %c0_24 = arith.constant 0 : index
    %c0_25 = arith.constant 0 : index
    %c0_26 = arith.constant 0 : index
    %44 = vector.load %arg6[%c0_23, %c0_24, %c0_25, %c0_26] : memref<1x1x8x8xbf16, #tpu.memory_space<vmem>>, vector<1x1x8x8xbf16>
    %45 = vector.shape_cast %44 : vector<1x1x8x8xbf16> to vector<8x8xbf16>
    %cst_27 = arith.constant dense<0.000000e+00> : vector<16x8xf32>
    %46 = tpu.matmul %43, %45, %cst_27 {dimension_numbers = #tpu.dot_dimension_numbers<[1], [0], [0], [1], [0, 0, 1, 1], [], []>} : vector<16x8xbf16>, vector<8x8xbf16>, vector<16x8xf32> -> vector<16x8xf32>
    %47 = arith.addf %42, %46 : vector<16x8xf32>
    %c0_28 = arith.constant 0 : index
    %c0_29 = arith.constant 0 : index
    %48 = vector.load %arg10[%c0_28, %c0_29] : memref<16x8xf32, #tpu.memory_space<vmem>>, vector<16x8xf32>
    tpu.vector_store %arg10[%c0_28, %c0_29], %47 {strides = array<i32>} : memref<16x8xf32, #tpu.memory_space<vmem>>, vector<16x8xf32>,
    %c0_30 = arith.constant 0 : index
    %c0_31 = arith.constant 0 : index
    %49 = vector.load %arg8[%c0_30, %c0_31] : memref<16x1xf32, #tpu.memory_space<vmem>>, vector<16x1xf32>
    tpu.vector_store %arg8[%c0_30, %c0_31], %28 {strides = array<i32>} : memref<16x1xf32, #tpu.memory_space<vmem>>, vector<16x1xf32>,
    %c0_i32_32 = arith.constant 0 : i32
    %50 = arith.cmpi eq, %arg3, %c0_i32_32 : i32
    %51 = arith.extui %50 : i1 to i32
    %c0_i32_33 = arith.constant 0 : i32
    %52 = arith.cmpi ne, %51, %c0_i32_33 : i32
    scf.if %52 {
      %c0_34 = arith.constant 0 : index
      %c0_35 = arith.constant 0 : index
      %53 = vector.load %arg10[%c0_34, %c0_35] : memref<16x8xf32, #tpu.memory_space<vmem>>, vector<16x8xf32>
      %c0_36 = arith.constant 0 : index
      %c0_37 = arith.constant 0 : index
      %54 = vector.load %arg9[%c0_36, %c0_37] : memref<16x1xf32, #tpu.memory_space<vmem>>, vector<16x1xf32>
      %55 = tpu.reciprocal %54 {approx = true} : vector<16x1xf32> -> vector<16x1xf32>
      %56 = vector.broadcast %55 : vector<16x1xf32> to vector<16x8xf32>
      %57 = arith.mulf %53, %56 : vector<16x8xf32>
      %58 = vector.shape_cast %57 : vector<16x8xf32> to vector<2x8x8xf32>
      %59 = arith.truncf %58 : vector<2x8x8xf32> to vector<2x8x8xbf16>
      %c0_38 = arith.constant 0 : index
      %c0_39 = arith.constant 0 : index
      %c0_40 = arith.constant 0 : index
      %c0_41 = arith.constant 0 : index
      %c0_42 = arith.constant 0 : index
      %60 = vector.load %arg7[%c0_38, %c0_39, %c0_40, %c0_41, %c0_42] : memref<1x1x2x8x8xbf16, #tpu.memory_space<vmem>>, vector<1x1x2x8x8xbf16>
      %61 = vector.shape_cast %60 : vector<1x1x2x8x8xbf16> to vector<2x8x8xbf16>
      %62 = vector.shape_cast %59 : vector<2x8x8xbf16> to vector<1x1x2x8x8xbf16>
      tpu.vector_store %arg7[%c0_38, %c0_39, %c0_40, %c0_41, %c0_42], %62 {strides = array<i32>} : memref<1x1x2x8x8xbf16, #tpu.memory_space<vmem>>, vector<1x1x2x8x8xbf16>,
    } else {
    }
    return
  }
  func.func @transform_0(%arg0: i32, %arg1: i32, %arg2: i32, %arg3: i32) -> (i32, i32, i32, i32, i32) {
    %c0_i32 = arith.constant 0 : i32
    %c0_i32_0 = arith.constant 0 : i32
    %c0_i32_1 = arith.constant 0 : i32
    return %arg0, %arg1, %c0_i32, %arg2, %c0_i32_0 : i32, i32, i32, i32, i32
  }
  func.func @transform_1(%arg0: i32, %arg1: i32, %arg2: i32, %arg3: i32) -> (i32, i32, i32, i32) {
    %c0_i32 = arith.constant 0 : i32
    %c0_i32_0 = arith.constant 0 : i32
    return %arg0, %arg1, %arg3, %c0_i32 : i32, i32, i32, i32
  }
  func.func @transform_2(%arg0: i32, %arg1: i32, %arg2: i32, %arg3: i32) -> (i32, i32, i32, i32) {
    %c0_i32 = arith.constant 0 : i32
    %c0_i32_0 = arith.constant 0 : i32
    return %arg0, %arg1, %arg3, %c0_i32 : i32, i32, i32, i32
  }
  func.func @transform_3(%arg0: i32, %arg1: i32, %arg2: i32, %arg3: i32) -> (i32, i32, i32, i32, i32) {
    %c0_i32 = arith.constant 0 : i32
    %c0_i32_0 = arith.constant 0 : i32
    %c0_i32_1 = arith.constant 0 : i32
    return %arg0, %arg1, %c0_i32, %arg2, %c0_i32_0 : i32, i32, i32, i32, i32
  }
}

module attributes {stable_mosaic.version = 11 : i64} {
  func.func @_linear_kernel(%arg0: i32, %arg1: i32, %arg2: i32, %arg3: memref<16x32xbf16, #tpu.memory_space<vmem>>, %arg4: memref<32x32xbf16, #tpu.memory_space<vmem>>, %arg5: memref<1x32xf32, #tpu.memory_space<vmem>>, %arg6: memref<16x32xf32, #tpu.memory_space<vmem>>, %arg7: memref<16x32xf32, #tpu.memory_space<vmem>>) attributes {dimension_semantics = [#tpu.dimension_semantics<parallel>, #tpu.dimension_semantics<parallel>, #tpu.dimension_semantics<arbitrary>], iteration_bounds = array<i64: 1, 1, 1>, scalar_prefetch = 0 : i64, scratch_operands = 0 : i64, tpu.core_type = #tpu.core_type<tc>, window_params = [{transform_indices = @transform_0, window_bounds = array<i64: 16, 32>}, {transform_indices = @transform_1, window_bounds = array<i64: 32, 32>}, {transform_indices = @transform_2, window_bounds = array<i64: 1, 32>}, {transform_indices = @transform_3, window_bounds = array<i64: 16, 32>}, {transform_indices = @transform_4, window_bounds = array<i64: 16, 32>}]} {
    %c0 = arith.constant 0 : index
    %c0_0 = arith.constant 0 : index
    %0 = vector.load %arg3[%c0, %c0_0] : memref<16x32xbf16, #tpu.memory_space<vmem>>, vector<16x32xbf16>
    %c0_1 = arith.constant 0 : index
    %c0_2 = arith.constant 0 : index
    %1 = vector.load %arg4[%c0_1, %c0_2] : memref<32x32xbf16, #tpu.memory_space<vmem>>, vector<32x32xbf16>
    %cst = arith.constant dense<0.000000e+00> : vector<16x32xf32>
    %2 = tpu.matmul %0, %1, %cst {dimension_numbers = #tpu.dot_dimension_numbers<[1], [0], [0], [1], [0, 0, 1, 1], [], []>} : vector<16x32xbf16>, vector<32x32xbf16>, vector<16x32xf32> -> vector<16x32xf32>
    %c0_i32 = arith.constant 0 : i32
    %3 = arith.cmpi eq, %arg2, %c0_i32 : i32
    %4 = arith.extui %3 : i1 to i32
    %c0_i32_3 = arith.constant 0 : i32
    %5 = arith.cmpi ne, %4, %c0_i32_3 : i32
    scf.if %5 {
      %cst_8 = arith.constant 0.000000e+00 : f32
      %9 = vector.broadcast %cst_8 : f32 to vector<16x32xf32>
      %c0_9 = arith.constant 0 : index
      %c0_10 = arith.constant 0 : index
      %10 = vector.load %arg5[%c0_9, %c0_10] : memref<1x32xf32, #tpu.memory_space<vmem>>, vector<1x32xf32>
      %11 = vector.broadcast %10 : vector<1x32xf32> to vector<16x32xf32>
      %12 = arith.addf %9, %11 : vector<16x32xf32>
      %c0_11 = arith.constant 0 : index
      %c0_12 = arith.constant 0 : index
      %13 = vector.load %arg6[%c0_11, %c0_12] : memref<16x32xf32, #tpu.memory_space<vmem>>, vector<16x32xf32>
      %14 = arith.addf %12, %13 : vector<16x32xf32>
      %c0_13 = arith.constant 0 : index
      %c0_14 = arith.constant 0 : index
      %15 = vector.load %arg7[%c0_13, %c0_14] : memref<16x32xf32, #tpu.memory_space<vmem>>, vector<16x32xf32>
      tpu.vector_store %arg7[%c0_13, %c0_14], %14 {strides = array<i32>} : memref<16x32xf32, #tpu.memory_space<vmem>>, vector<16x32xf32>,
    } else {
    }
    %c0_4 = arith.constant 0 : index
    %c0_5 = arith.constant 0 : index
    %6 = vector.load %arg7[%c0_4, %c0_5] : memref<16x32xf32, #tpu.memory_space<vmem>>, vector<16x32xf32>
    %7 = arith.addf %6, %2 : vector<16x32xf32>
    %c0_6 = arith.constant 0 : index
    %c0_7 = arith.constant 0 : index
    %8 = vector.load %arg7[%c0_6, %c0_7] : memref<16x32xf32, #tpu.memory_space<vmem>>, vector<16x32xf32>
    tpu.vector_store %arg7[%c0_6, %c0_7], %7 {strides = array<i32>} : memref<16x32xf32, #tpu.memory_space<vmem>>, vector<16x32xf32>,
    return
  }
  func.func @transform_0(%arg0: i32, %arg1: i32, %arg2: i32) -> (i32, i32) {
    %c0_i32 = arith.constant 0 : i32
    return %arg0, %arg2 : i32, i32
  }
  func.func @transform_1(%arg0: i32, %arg1: i32, %arg2: i32) -> (i32, i32) {
    %c0_i32 = arith.constant 0 : i32
    return %arg2, %arg1 : i32, i32
  }
  func.func @transform_2(%arg0: i32, %arg1: i32, %arg2: i32) -> (i32, i32) {
    %c0_i32 = arith.constant 0 : i32
    %c0_i32_0 = arith.constant 0 : i32
    return %c0_i32, %arg1 : i32, i32
  }
  func.func @transform_3(%arg0: i32, %arg1: i32, %arg2: i32) -> (i32, i32) {
    %c0_i32 = arith.constant 0 : i32
    return %arg0, %arg1 : i32, i32
  }
  func.func @transform_4(%arg0: i32, %arg1: i32, %arg2: i32) -> (i32, i32) {
    %c0_i32 = arith.constant 0 : i32
    return %arg0, %arg1 : i32, i32
  }
}

module attributes {stable_mosaic.version = 11 : i64} {
  func.func @_linear_kernel(%arg0: i32, %arg1: i32, %arg2: i32, %arg3: memref<16x32xbf16, #tpu.memory_space<vmem>>, %arg4: memref<32x32xbf16, #tpu.memory_space<vmem>>, %arg5: memref<1x32xf32, #tpu.memory_space<vmem>>, %arg6: memref<16x32xbf16, #tpu.memory_space<vmem>>, %arg7: memref<16x32xf32, #tpu.memory_space<vmem>>) attributes {dimension_semantics = [#tpu.dimension_semantics<parallel>, #tpu.dimension_semantics<parallel>, #tpu.dimension_semantics<arbitrary>], iteration_bounds = array<i64: 1, 1, 1>, scalar_prefetch = 0 : i64, scratch_operands = 1 : i64, tpu.core_type = #tpu.core_type<tc>, window_params = [{transform_indices = @transform_0, window_bounds = array<i64: 16, 32>}, {transform_indices = @transform_1, window_bounds = array<i64: 32, 32>}, {transform_indices = @transform_2, window_bounds = array<i64: 1, 32>}, {transform_indices = @transform_3, window_bounds = array<i64: 16, 32>}]} {
    %c0 = arith.constant 0 : index
    %c0_0 = arith.constant 0 : index
    %0 = vector.load %arg3[%c0, %c0_0] : memref<16x32xbf16, #tpu.memory_space<vmem>>, vector<16x32xbf16>
    %c0_1 = arith.constant 0 : index
    %c0_2 = arith.constant 0 : index
    %1 = vector.load %arg4[%c0_1, %c0_2] : memref<32x32xbf16, #tpu.memory_space<vmem>>, vector<32x32xbf16>
    %cst = arith.constant dense<0.000000e+00> : vector<16x32xf32>
    %2 = tpu.matmul %0, %1, %cst {dimension_numbers = #tpu.dot_dimension_numbers<[1], [0], [0], [1], [0, 0, 1, 1], [], []>} : vector<16x32xbf16>, vector<32x32xbf16>, vector<16x32xf32> -> vector<16x32xf32>
    %c0_i32 = arith.constant 0 : i32
    %3 = arith.cmpi eq, %arg2, %c0_i32 : i32
    %4 = arith.extui %3 : i1 to i32
    %c0_i32_3 = arith.constant 0 : i32
    %5 = arith.cmpi ne, %4, %c0_i32_3 : i32
    scf.if %5 {
      %cst_10 = arith.constant 0.000000e+00 : f32
      %12 = vector.broadcast %cst_10 : f32 to vector<16x32xf32>
      %c0_11 = arith.constant 0 : index
      %c0_12 = arith.constant 0 : index
      %13 = vector.load %arg7[%c0_11, %c0_12] : memref<16x32xf32, #tpu.memory_space<vmem>>, vector<16x32xf32>
      tpu.vector_store %arg7[%c0_11, %c0_12], %12 {strides = array<i32>} : memref<16x32xf32, #tpu.memory_space<vmem>>, vector<16x32xf32>,
    } else {
    }
    %c0_4 = arith.constant 0 : index
    %c0_5 = arith.constant 0 : index
    %6 = vector.load %arg7[%c0_4, %c0_5] : memref<16x32xf32, #tpu.memory_space<vmem>>, vector<16x32xf32>
    %7 = arith.addf %6, %2 : vector<16x32xf32>
    %c0_6 = arith.constant 0 : index
    %c0_7 = arith.constant 0 : index
    %8 = vector.load %arg7[%c0_6, %c0_7] : memref<16x32xf32, #tpu.memory_space<vmem>>, vector<16x32xf32>
    tpu.vector_store %arg7[%c0_6, %c0_7], %7 {strides = array<i32>} : memref<16x32xf32, #tpu.memory_space<vmem>>, vector<16x32xf32>,
    %c0_i32_8 = arith.constant 0 : i32
    %9 = arith.cmpi eq, %arg2, %c0_i32_8 : i32
    %10 = arith.extui %9 : i1 to i32
    %c0_i32_9 = arith.constant 0 : i32
    %11 = arith.cmpi ne, %10, %c0_i32_9 : i32
    scf.if %11 {
      %c0_10 = arith.constant 0 : index
      %c0_11 = arith.constant 0 : index
      %12 = vector.load %arg7[%c0_10, %c0_11] : memref<16x32xf32, #tpu.memory_space<vmem>>, vector<16x32xf32>
      %c0_12 = arith.constant 0 : index
      %c0_13 = arith.constant 0 : index
      %13 = vector.load %arg5[%c0_12, %c0_13] : memref<1x32xf32, #tpu.memory_space<vmem>>, vector<1x32xf32>
      %14 = vector.broadcast %13 : vector<1x32xf32> to vector<16x32xf32>
      %15 = arith.addf %12, %14 : vector<16x32xf32>
      %16 = arith.truncf %15 : vector<16x32xf32> to vector<16x32xbf16>
      %c0_14 = arith.constant 0 : index
      %c0_15 = arith.constant 0 : index
      %17 = vector.load %arg6[%c0_14, %c0_15] : memref<16x32xbf16, #tpu.memory_space<vmem>>, vector<16x32xbf16>
      tpu.vector_store %arg6[%c0_14, %c0_15], %16 {strides = array<i32>} : memref<16x32xbf16, #tpu.memory_space<vmem>>, vector<16x32xbf16>,
    } else {
    }
    return
  }
  func.func @transform_0(%arg0: i32, %arg1: i32, %arg2: i32) -> (i32, i32) {
    %c0_i32 = arith.constant 0 : i32
    return %arg0, %arg2 : i32, i32
  }
  func.func @transform_1(%arg0: i32, %arg1: i32, %arg2: i32) -> (i32, i32) {
    %c0_i32 = arith.constant 0 : i32
    return %arg2, %arg1 : i32, i32
  }
  func.func @transform_2(%arg0: i32, %arg1: i32, %arg2: i32) -> (i32, i32) {
    %c0_i32 = arith.constant 0 : i32
    %c0_i32_0 = arith.constant 0 : i32
    return %c0_i32, %arg1 : i32, i32
  }
  func.func @transform_3(%arg0: i32, %arg1: i32, %arg2: i32) -> (i32, i32) {
    %c0_i32 = arith.constant 0 : i32
    return %arg0, %arg1 : i32, i32
  }
}

module attributes {stable_mosaic.version = 11 : i64} {
  func.func @_cross_attention_kernel(%arg0: i32, %arg1: i32, %arg2: i32, %arg3: memref<1x1x2x8x8xbf16, #tpu.memory_space<vmem>>, %arg4: memref<1x1x8x8xbf16, #tpu.memory_space<vmem>>, %arg5: memref<1x1x8x8xbf16, #tpu.memory_space<vmem>>, %arg6: memref<1x1x2x8x8xbf16, #tpu.memory_space<vmem>>, %arg7: memref<1x1x2x8x8xf32, #tpu.memory_space<vmem>>) attributes {dimension_semantics = [#tpu.dimension_semantics<parallel>, #tpu.dimension_semantics<parallel>, #tpu.dimension_semantics<parallel>], iteration_bounds = array<i64: 2, 2, 1>, scalar_prefetch = 0 : i64, scratch_operands = 0 : i64, tpu.core_type = #tpu.core_type<tc>, window_params = [{transform_indices = @transform_0, window_bounds = array<i64: 1, 1, 2, 8, 8>}, {transform_indices = @transform_1, window_bounds = array<i64: 1, 1, 8, 8>}, {transform_indices = @transform_2, window_bounds = array<i64: 1, 1, 8, 8>}, {transform_indices = @transform_3, window_bounds = array<i64: 1, 1, 2, 8, 8>}, {transform_indices = @transform_4, window_bounds = array<i64: 1, 1, 2, 8, 8>}]} {
    %c0 = arith.constant 0 : index
    %c0_0 = arith.constant 0 : index
    %c0_1 = arith.constant 0 : index
    %c0_2 = arith.constant 0 : index
    %c0_3 = arith.constant 0 : index
    %0 = vector.load %arg3[%c0, %c0_0, %c0_1, %c0_2, %c0_3] : memref<1x1x2x8x8xbf16, #tpu.memory_space<vmem>>, vector<1x1x2x8x8xbf16>
    %1 = vector.shape_cast %0 : vector<1x1x2x8x8xbf16> to vector<2x8x8xbf16>
    %2 = vector.shape_cast %1 : vector<2x8x8xbf16> to vector<16x8xbf16>
    %c0_4 = arith.constant 0 : index
    %c0_5 = arith.constant 0 : index
    %c0_6 = arith.constant 0 : index
    %c0_7 = arith.constant 0 : index
    %3 = vector.load %arg4[%c0_4, %c0_5, %c0_6, %c0_7] : memref<1x1x8x8xbf16, #tpu.memory_space<vmem>>, vector<1x1x8x8xbf16>
    %4 = vector.shape_cast %3 : vector<1x1x8x8xbf16> to vector<8x8xbf16>
    %cst = arith.constant dense<0.000000e+00> : vector<16x8xf32>
    %5 = tpu.matmul %2, %4, %cst {dimension_numbers = #tpu.dot_dimension_numbers<[1], [1], [0], [0], [0, 0, 1, 0], [], []>} : vector<16x8xbf16>, vector<8x8xbf16>, vector<16x8xf32> -> vector<16x8xf32>
    %cst_8 = arith.constant 0.353553385 : f32
    %6 = vector.broadcast %cst_8 : f32 to vector<16x8xf32>
    %7 = arith.mulf %5, %6 : vector<16x8xf32>
    %cst_9 = arith.constant dense<0xFF800000> : vector<16xf32>
    %8 = vector.multi_reduction <maximumf>, %7, %cst_9 [1] : vector<16x8xf32> to vector<16xf32>
    %9 = vector.shape_cast %8 : vector<16xf32> to vector<16x1xf32>
    %10 = vector.broadcast %9 : vector<16x1xf32> to vector<16x8xf32>
    %11 = arith.subf %7, %10 : vector<16x8xf32>
    %12 = math.exp %11 : vector<16x8xf32>
    %cst_10 = arith.constant dense<0.000000e+00> : vector<16xf32>
    %13 = vector.multi_reduction <add>, %12, %cst_10 [1] : vector<16x8xf32> to vector<16xf32>
    %14 = vector.shape_cast %13 : vector<16xf32> to vector<16x1xf32>
    %15 = vector.broadcast %14 : vector<16x1xf32> to vector<16x8xf32>
    %16 = arith.divf %12, %15 : vector<16x8xf32>
    %17 = vector.shape_cast %16 : vector<16x8xf32> to vector<2x8x8xf32>
    %c0_11 = arith.constant 0 : index
    %c0_12 = arith.constant 0 : index
    %c0_13 = arith.constant 0 : index
    %c0_14 = arith.constant 0 : index
    %c0_15 = arith.constant 0 : index
    %18 = vector.load %arg7[%c0_11, %c0_12, %c0_13, %c0_14, %c0_15] : memref<1x1x2x8x8xf32, #tpu.memory_space<vmem>>, vector<1x1x2x8x8xf32>
    %19 = vector.shape_cast %18 : vector<1x1x2x8x8xf32> to vector<2x8x8xf32>
    %20 = vector.shape_cast %17 : vector<2x8x8xf32> to vector<1x1x2x8x8xf32>
    tpu.vector_store %arg7[%c0_11, %c0_12, %c0_13, %c0_14, %c0_15], %20 {strides = array<i32>} : memref<1x1x2x8x8xf32, #tpu.memory_space<vmem>>, vector<1x1x2x8x8xf32>,
    %21 = arith.truncf %16 : vector<16x8xf32> to vector<16x8xbf16>
    %c0_16 = arith.constant 0 : index
    %c0_17 = arith.constant 0 : index
    %c0_18 = arith.constant 0 : index
    %c0_19 = arith.constant 0 : index
    %22 = vector.load %arg5[%c0_16, %c0_17, %c0_18, %c0_19] : memref<1x1x8x8xbf16, #tpu.memory_space<vmem>>, vector<1x1x8x8xbf16>
    %23 = vector.shape_cast %22 : vector<1x1x8x8xbf16> to vector<8x8xbf16>
    %cst_20 = arith.constant dense<0.000000e+00> : vector<16x8xf32>
    %24 = tpu.matmul %21, %23, %cst_20 {dimension_numbers = #tpu.dot_dimension_numbers<[1], [0], [0], [1], [0, 0, 1, 1], [], []>} : vector<16x8xbf16>, vector<8x8xbf16>, vector<16x8xf32> -> vector<16x8xf32>
    %25 = vector.shape_cast %24 : vector<16x8xf32> to vector<2x8x8xf32>
    %26 = arith.truncf %25 : vector<2x8x8xf32> to vector<2x8x8xbf16>
    %c0_21 = arith.constant 0 : index
    %c0_22 = arith.constant 0 : index
    %c0_23 = arith.constant 0 : index
    %c0_24 = arith.constant 0 : index
    %c0_25 = arith.constant 0 : index
    %27 = vector.load %arg6[%c0_21, %c0_22, %c0_23, %c0_24, %c0_25] : memref<1x1x2x8x8xbf16, #tpu.memory_space<vmem>>, vector<1x1x2x8x8xbf16>
    %28 = vector.shape_cast %27 : vector<1x1x2x8x8xbf16> to vector<2x8x8xbf16>
    %29 = vector.shape_cast %26 : vector<2x8x8xbf16> to vector<1x1x2x8x8xbf16>
    tpu.vector_store %arg6[%c0_21, %c0_22, %c0_23, %c0_24, %c0_25], %29 {strides = array<i32>} : memref<1x1x2x8x8xbf16, #tpu.memory_space<vmem>>, vector<1x1x2x8x8xbf16>,
    return
  }
  func.func @transform_0(%arg0: i32, %arg1: i32, %arg2: i32) -> (i32, i32, i32, i32, i32) {
    %c0_i32 = arith.constant 0 : i32
    %c0_i32_0 = arith.constant 0 : i32
    %c0_i32_1 = arith.constant 0 : i32
    return %arg0, %arg1, %c0_i32, %arg2, %c0_i32_0 : i32, i32, i32, i32, i32
  }
  func.func @transform_1(%arg0: i32, %arg1: i32, %arg2: i32) -> (i32, i32, i32, i32) {
    %c0_i32 = arith.constant 0 : i32
    %c0_i32_0 = arith.constant 0 : i32
    %c0_i32_1 = arith.constant 0 : i32
    return %arg0, %arg1, %c0_i32, %c0_i32_0 : i32, i32, i32, i32
  }
  func.func @transform_2(%arg0: i32, %arg1: i32, %arg2: i32) -> (i32, i32, i32, i32) {
    %c0_i32 = arith.constant 0 : i32
    %c0_i32_0 = arith.constant 0 : i32
    %c0_i32_1 = arith.constant 0 : i32
    return %arg0, %arg1, %c0_i32, %c0_i32_0 : i32, i32, i32, i32
  }
  func.func @transform_3(%arg0: i32, %arg1: i32, %arg2: i32) -> (i32, i32, i32, i32, i32) {
    %c0_i32 = arith.constant 0 : i32
    %c0_i32_0 = arith.constant 0 : i32
    %c0_i32_1 = arith.constant 0 : i32
    return %arg0, %arg1, %c0_i32, %arg2, %c0_i32_0 : i32, i32, i32, i32, i32
  }
  func.func @transform_4(%arg0: i32, %arg1: i32, %arg2: i32) -> (i32, i32, i32, i32, i32) {
    %c0_i32 = arith.constant 0 : i32
    %c0_i32_0 = arith.constant 0 : i32
    %c0_i32_1 = arith.constant 0 : i32
    return %arg0, %arg1, %c0_i32, %arg2, %c0_i32_0 : i32, i32, i32, i32, i32
  }
}

module attributes {stable_mosaic.version = 11 : i64} {
  func.func @_mlp_kernel(%arg0: i32, %arg1: i32, %arg2: memref<16x32xbf16, #tpu.memory_space<vmem>>, %arg3: memref<32x64xbf16, #tpu.memory_space<vmem>>, %arg4: memref<32x64xbf16, #tpu.memory_space<vmem>>, %arg5: memref<64x32xbf16, #tpu.memory_space<vmem>>, %arg6: memref<16x32xf32, #tpu.memory_space<vmem>>, %arg7: memref<16x32xf32, #tpu.memory_space<vmem>>) attributes {dimension_semantics = [#tpu.dimension_semantics<parallel>, #tpu.dimension_semantics<arbitrary>], iteration_bounds = array<i64: 1, 1>, scalar_prefetch = 0 : i64, scratch_operands = 0 : i64, tpu.core_type = #tpu.core_type<tc>, window_params = [{transform_indices = @transform_0, window_bounds = array<i64: 16, 32>}, {transform_indices = @transform_1, window_bounds = array<i64: 32, 64>}, {transform_indices = @transform_2, window_bounds = array<i64: 32, 64>}, {transform_indices = @transform_3, window_bounds = array<i64: 64, 32>}, {transform_indices = @transform_4, window_bounds = array<i64: 16, 32>}, {transform_indices = @transform_5, window_bounds = array<i64: 16, 32>}]} {
    %c0_i32 = arith.constant 0 : i32
    %0 = arith.cmpi eq, %arg1, %c0_i32 : i32
    %1 = arith.extui %0 : i1 to i32
    %c0_i32_0 = arith.constant 0 : i32
    %2 = arith.cmpi ne, %1, %c0_i32_0 : i32
    scf.if %2 {
      %c0_15 = arith.constant 0 : index
      %c0_16 = arith.constant 0 : index
      %21 = vector.load %arg6[%c0_15, %c0_16] : memref<16x32xf32, #tpu.memory_space<vmem>>, vector<16x32xf32>
      %c0_17 = arith.constant 0 : index
      %c0_18 = arith.constant 0 : index
      %22 = vector.load %arg7[%c0_17, %c0_18] : memref<16x32xf32, #tpu.memory_space<vmem>>, vector<16x32xf32>
      tpu.vector_store %arg7[%c0_17, %c0_18], %21 {strides = array<i32>} : memref<16x32xf32, #tpu.memory_space<vmem>>, vector<16x32xf32>,
    } else {
    }
    %c0 = arith.constant 0 : index
    %c0_1 = arith.constant 0 : index
    %3 = vector.load %arg2[%c0, %c0_1] : memref<16x32xbf16, #tpu.memory_space<vmem>>, vector<16x32xbf16>
    %c0_2 = arith.constant 0 : index
    %c0_3 = arith.constant 0 : index
    %4 = vector.load %arg3[%c0_2, %c0_3] : memref<32x64xbf16, #tpu.memory_space<vmem>>, vector<32x64xbf16>
    %cst = arith.constant dense<0.000000e+00> : vector<16x64xf32>
    %5 = tpu.matmul %3, %4, %cst {dimension_numbers = #tpu.dot_dimension_numbers<[1], [0], [0], [1], [0, 0, 1, 1], [], []>} : vector<16x32xbf16>, vector<32x64xbf16>, vector<16x64xf32> -> vector<16x64xf32>
    %c0_4 = arith.constant 0 : index
    %c0_5 = arith.constant 0 : index
    %6 = vector.load %arg4[%c0_4, %c0_5] : memref<32x64xbf16, #tpu.memory_space<vmem>>, vector<32x64xbf16>
    %cst_6 = arith.constant dense<0.000000e+00> : vector<16x64xf32>
    %7 = tpu.matmul %3, %6, %cst_6 {dimension_numbers = #tpu.dot_dimension_numbers<[1], [0], [0], [1], [0, 0, 1, 1], [], []>} : vector<16x32xbf16>, vector<32x64xbf16>, vector<16x64xf32> -> vector<16x64xf32>
    %8 = arith.negf %5 : vector<16x64xf32>
    %9 = math.exp %8 : vector<16x64xf32>
    %cst_7 = arith.constant 1.000000e+00 : f32
    %10 = vector.broadcast %cst_7 : f32 to vector<16x64xf32>
    %11 = arith.addf %10, %9 : vector<16x64xf32>
    %12 = arith.divf %10, %11 : vector<16x64xf32>
    %13 = arith.mulf %5, %12 : vector<16x64xf32>
    %14 = arith.mulf %13, %7 : vector<16x64xf32>
    %15 = arith.truncf %14 : vector<16x64xf32> to vector<16x64xbf16>
    %c0_8 = arith.constant 0 : index
    %c0_9 = arith.constant 0 : index
    %16 = vector.load %arg7[%c0_8, %c0_9] : memref<16x32xf32, #tpu.memory_space<vmem>>, vector<16x32xf32>
    %c0_10 = arith.constant 0 : index
    %c0_11 = arith.constant 0 : index
    %17 = vector.load %arg5[%c0_10, %c0_11] : memref<64x32xbf16, #tpu.memory_space<vmem>>, vector<64x32xbf16>
    %cst_12 = arith.constant dense<0.000000e+00> : vector<16x32xf32>
    %18 = tpu.matmul %15, %17, %cst_12 {dimension_numbers = #tpu.dot_dimension_numbers<[1], [0], [0], [1], [0, 0, 1, 1], [], []>} : vector<16x64xbf16>, vector<64x32xbf16>, vector<16x32xf32> -> vector<16x32xf32>
    %19 = arith.addf %16, %18 : vector<16x32xf32>
    %c0_13 = arith.constant 0 : index
    %c0_14 = arith.constant 0 : index
    %20 = vector.load %arg7[%c0_13, %c0_14] : memref<16x32xf32, #tpu.memory_space<vmem>>, vector<16x32xf32>
    tpu.vector_store %arg7[%c0_13, %c0_14], %19 {strides = array<i32>} : memref<16x32xf32, #tpu.memory_space<vmem>>, vector<16x32xf32>,
    return
  }
  func.func @transform_0(%arg0: i32, %arg1: i32) -> (i32, i32) {
    %c0_i32 = arith.constant 0 : i32
    %c0_i32_0 = arith.constant 0 : i32
    return %arg0, %c0_i32 : i32, i32
  }
  func.func @transform_1(%arg0: i32, %arg1: i32) -> (i32, i32) {
    %c0_i32 = arith.constant 0 : i32
    %c0_i32_0 = arith.constant 0 : i32
    return %c0_i32, %arg1 : i32, i32
  }
  func.func @transform_2(%arg0: i32, %arg1: i32) -> (i32, i32) {
    %c0_i32 = arith.constant 0 : i32
    %c0_i32_0 = arith.constant 0 : i32
    return %c0_i32, %arg1 : i32, i32
  }
  func.func @transform_3(%arg0: i32, %arg1: i32) -> (i32, i32) {
    %c0_i32 = arith.constant 0 : i32
    %c0_i32_0 = arith.constant 0 : i32
    return %arg1, %c0_i32 : i32, i32
  }
  func.func @transform_4(%arg0: i32, %arg1: i32) -> (i32, i32) {
    %c0_i32 = arith.constant 0 : i32
    %c0_i32_0 = arith.constant 0 : i32
    return %arg0, %c0_i32 : i32, i32
  }
  func.func @transform_5(%arg0: i32, %arg1: i32) -> (i32, i32) {
    %c0_i32 = arith.constant 0 : i32
    %c0_i32_0 = arith.constant 0 : i32
    return %arg0, %c0_i32 : i32, i32
  }
}

</mosaic_0001>

<llo_original>
// kernel: decoder_layer_forward.11
$region0: #{decoder_layer_forward.11}
  #allocation0 [shape = 'u32[]', space=smem, size = 0x4, offset = 0x4, fixed_abs, tag = 'smem constant byte address 0x4 - core index']
  #allocation1 [shape = 'u32[144,128]{1,0:T(1,128)}', space=vmem, size = 0x12000, scoped, tag = 'internal scratch']
  %s0 = inlined_call_operand.vmem [shape: f32[16,32], index: 0, kind: input, shape index: {}]
  %s1 = inlined_call_operand.vmem [shape: f32[1,32], index: 1, kind: input, shape index: {}]
  %s2 = inlined_call_operand.vmem [shape: f32[1,32], index: 2, kind: input, shape index: {}]
  %s3 = inlined_call_operand.vmem [shape: bf16[16,32], index: 3, kind: output, shape index: {}]
  %s4 = sld [smem:[#allocation0]]
  $region22: #{decoder_layer_forward.11} parent=0
    _
  %s6 = ssub.s32 1, %s4
  %s7 = scalar_select 0, %s6, %s4
  // Predicated region
  $region2: #{decoder_layer_forward.11} parent=0 // pred_check
    _
  $region3: #{decoder_layer_forward.11} parent=0 // pred_check_branch
    %9 = sbr.rel (0) target = $region5
  $region4: #{decoder_layer_forward.11} parent=0 // pred_region
    _
  $region5: #{decoder_layer_forward.11} parent=0 // pred_fallthru
    _
  // Predicated region
  $region6: #{decoder_layer_forward.11} parent=0 // pred_check
    _
  $region7: #{decoder_layer_forward.11} parent=0 // pred_check_branch
    %11 = sbr.rel (0) target = $region9
  $region8: #{decoder_layer_forward.11} parent=0 // pred_region
    _
  $region9: #{decoder_layer_forward.11} parent=0 // pred_fallthru
    _
  // Predicated region
  $region10: #{decoder_layer_forward.11} parent=0 // pred_check
    _
  $region11: #{decoder_layer_forward.11} parent=0 // pred_check_branch
    %13 = sbr.rel (0) target = $region13
  $region12: #{decoder_layer_forward.11} parent=0 // pred_region
    _
  $region13: #{decoder_layer_forward.11} parent=0 // pred_fallthru
    _
  %v14 = vld [vmem:[%s0] sm:$0xff]
  %v15 = vld [vmem:[%s0 + $0x8] sm:$0xff]
  %vm16 = vcmask 261120
  %v17 = vsel %vm16, %v14, 0.0
  %18 = vadd.xlane.f32.xlu0 %v17
  %v19 = vpop.xlane.xlu0 %18
  %v20 = vsel %vm16, %v15, 0.0
  %21 = vadd.xlane.f32.xlu0 %v20
  %v22 = vpop.xlane.xlu0 %21
  %v23 = vrcp.pop 32.0
  %v24 = vmul.f32 %v19, %v23
  %v25 = vmul.f32 %v22, %v23
  %v26 = vsub.f32 %v14, %v24
  %v27 = vsub.f32 %v15, %v25
  %v28 = vmul.f32 %v26, %v26
  %v29 = vmul.f32 %v27, %v27
  %v30 = vsel %vm16, %v28, 0.0
  %31 = vadd.xlane.f32.xlu0 %v30
  %v32 = vpop.xlane.xlu0 %31
  %v33 = vsel %vm16, %v29, 0.0
  %34 = vadd.xlane.f32.xlu0 %v33
  %v35 = vpop.xlane.xlu0 %34
  %v36 = vmul.f32 %v32, %v23
  %v37 = vmul.f32 %v35, %v23
  %v38 = vadd.f32 %v36, 1e-05
  %v39 = vadd.f32 %v37, 1e-05
  %v40 = vrsqrt.pop %v38
  %v41 = vrsqrt.pop %v39
  %v42 = vmul.f32 %v26, %v40
  %v43 = vmul.f32 %v27, %v41
  %v44 = vld [vmem:[%s1] sm:$0x1]
  %v46 = vlaneseq
  %v47 = vshrl.u32 %v46, 7
  %v48 = vsub.s32 0, %v47
  %v49 = vrot.slane %v44, %v48
  %v51 = vmul.f32 %v42, %v49
  %v52 = vmul.f32 %v43, %v49
  %v53 = vld [vmem:[%s2] sm:$0x1]
  %v55 = vlaneseq
  %v56 = vshrl.u32 %v55, 7
  %v57 = vsub.s32 0, %v56
  %v58 = vrot.slane %v53, %v57
  %v60 = vadd.f32 %v51, %v58
  %v61 = vadd.f32 %v52, %v58
  %v62 = vpack.c.bf16 %v61, %v60
  %v64 = vunpack.c.l.b16 %v62
  %v65 = vunpack.c.h.b16 %v62
  %v66 = vpack.c.b16 %v64, %v64
  %v67 = vpack.c.b16 %v65, %v65
  %vm70 = vcmask 257024
  %71 = vst.msk [vmem:[%s3] sm:$0xf] %vm70, %v66
  %72 = vst.msk [vmem:[%s3 + $0x4] sm:$0xf] %vm70, %v67
  // Predicated region
  $region14: #{decoder_layer_forward.11} parent=0 // pred_check
    _
  $region15: #{decoder_layer_forward.11} parent=0 // pred_check_branch
    %74 = sbr.rel (0) target = $region17
  $region16: #{decoder_layer_forward.11} parent=0 // pred_region
    _
  $region17: #{decoder_layer_forward.11} parent=0 // pred_fallthru
    _
  // Predicated region
  $region18: #{decoder_layer_forward.11} parent=0 // pred_check
    _
  $region19: #{decoder_layer_forward.11} parent=0 // pred_check_branch
    %76 = sbr.rel (0) target = $region21
  $region20: #{decoder_layer_forward.11} parent=0 // pred_region
    _
  $region21: #{decoder_layer_forward.11} parent=0 // pred_fallthru
    _

// kernel: decoder_layer_forward.12
$region0: #{decoder_layer_forward.12}
  #allocation0 [shape = 'u32[]', space=smem, size = 0x4, offset = 0x4, fixed_abs, tag = 'smem constant byte address 0x4 - core index']
  #allocation1 [shape = 'u32[144,128]{1,0:T(1,128)}', space=vmem, size = 0x12000, scoped, tag = 'internal scratch']
  #allocation2 [shape = 'f32[16,64]{1,0:T(8,128)}', space=vmem, size = 0x2000, scoped, tag = 'scratch operand']
  %s0 = inlined_call_operand.vmem [shape: bf16[16,32], index: 0, kind: input, shape index: {}]
  %s1 = inlined_call_operand.vmem [shape: bf16[32,64], index: 1, kind: input, shape index: {}]
  %s2 = inlined_call_operand.vmem [shape: f32[1,64], index: 2, kind: input, shape index: {}]
  %s3 = inlined_call_operand.vmem [shape: bf16[16,64], index: 3, kind: output, shape index: {}]
  %s4 = sld [smem:[#allocation0]]
  $region30: #{decoder_layer_forward.12} parent=0
    _
  %s6 = ssub.s32 1, %s4
  %s7 = scalar_select 0, %s6, %s4
  // Predicated region
  $region2: #{decoder_layer_forward.12} parent=0 // pred_check
    _
  $region3: #{decoder_layer_forward.12} parent=0 // pred_check_branch
    %9 = sbr.rel (0) target = $region5
  $region4: #{decoder_layer_forward.12} parent=0 // pred_region
    _
  $region5: #{decoder_layer_forward.12} parent=0 // pred_fallthru
    _
  // Predicated region
  $region6: #{decoder_layer_forward.12} parent=0 // pred_check
    _
  $region7: #{decoder_layer_forward.12} parent=0 // pred_check_branch
    %11 = sbr.rel (0) target = $region9
  $region8: #{decoder_layer_forward.12} parent=0 // pred_region
    _
  $region9: #{decoder_layer_forward.12} parent=0 // pred_fallthru
    _
  // Predicated region
  $region10: #{decoder_layer_forward.12} parent=0 // pred_check
    _
  $region11: #{decoder_layer_forward.12} parent=0 // pred_check_branch
    %13 = sbr.rel (0) target = $region13
  $region12: #{decoder_layer_forward.12} parent=0 // pred_region
    _
  $region13: #{decoder_layer_forward.12} parent=0 // pred_fallthru
    _
  %v15 = vld [vmem:[%s0] sm:$0xf]
  %v16 = vld [vmem:[%s0 + $0x4] sm:$0xf]
  %v17 = vld [vmem:[%s1] sm:$0xf]
  %v18 = vld [vmem:[%s1 + $0x4] sm:$0xf]
  %v19 = vld [vmem:[%s1 + $0x8] sm:$0xf]
  %v20 = vld [vmem:[%s1 + $0xc] sm:$0xf]
  %v23 = vunpack.c.l.b16 %v15
  %v24 = vunpack.c.l.b16 %v16
  %v25 = vpack.c.b16 %v24, %v23
  %v30 = vunpack.c.l.b16 %v17
  %v31 = vunpack.c.l.b16 %v18
  %v32 = vunpack.c.l.b16 %v19
  %v33 = vunpack.c.l.b16 %v20
  %v34 = vpack.c.b16 %v31, %v30
  %v35 = vpack.c.b16 %v33, %v32
  %vm38 = vcmask 261120
  %v40 = vsel %vm38, %v25, 0
  %42 = vmatprep.subr.bf16.mxu0 0
  %43 = vmatpush1.bf16.msra.mxu0 0
  %44 = vmatprep.subr.bf16.mxu0 0
  %45 = vmatpush1.bf16.msra.mxu0 0
  %46 = vmatprep.subr.bf16.mxu0 0
  %47 = vmatpush1.bf16.msra.mxu0 0
  %48 = vmatprep.subr.bf16.mxu0 0
  %49 = vmatpush1.bf16.msra.mxu0 0
  %50 = vmatprep.subr.bf16.mxu0 0
  %51 = vmatpush1.bf16.msra.mxu0 0
  %52 = vmatprep.subr.bf16.mxu0 0
  %53 = vmatpush1.bf16.msra.mxu0 0
  %54 = vmatprep.subr.bf16.mxu0 0
  %55 = vmatpush1.bf16.msra.mxu0 %v35
  %56 = vmatprep.subr.bf16.mxu0 0
  %57 = vmatpush1.bf16.msra.mxu0 %v34
  %58 = vmatprep.subr.bf16.mxu0 0
  %59 = vmatpush2.bf16.msra.mxu0 0
  %60 = vmatprep.subr.bf16.mxu0 0
  %61 = vmatpush2.bf16.msra.mxu0 0
  %62 = vmatprep.subr.bf16.mxu0 0
  %63 = vmatpush2.bf16.msra.mxu0 0
  %64 = vmatprep.subr.bf16.mxu0 0
  %65 = vmatpush2.bf16.msra.mxu0 0
  %66 = vmatprep.subr.bf16.mxu0 0
  %67 = vmatpush2.bf16.msra.mxu0 0
  %68 = vmatprep.subr.bf16.mxu0 0
  %69 = vmatpush2.bf16.msra.mxu0 0
  %70 = vmatprep.subr.bf16.mxu0 0
  %71 = vmatpush2.bf16.msra.mxu0 0
  %72 = vmatprep.subr.bf16.mxu0 0
  %73 = vmatpush2.bf16.msra.mxu0 0
  %74 = vmatprep.mubr.bf16.mxu0 0
  %75 = vmatmul.mubr.bf16.gmra.mxu0 %v40
  %v76 = vpop.f32.mrf.mxu0
  %v77 = vadd.f32 0.0, %v76
  %v78 = vpop.f32.mrf.mxu0
  %v79 = vpop.f32.mrf.mxu0
  %v80 = vadd.f32 0.0, %v79
  %v81 = vpop.f32.mrf.mxu0
  %82 = vdwg.mxu0
  %p83 = scmp.eq.s32.totalorder 0, 0
  // Predicated region
  $region14: #{decoder_layer_forward.12} parent=0 // pred_check
    %p84 = pneg %p83
  $region15: #{decoder_layer_forward.12} parent=0 // pred_check_branch
    %86 = sbr.rel (%p84) target = $region17
  $region16: #{decoder_layer_forward.12} parent=0 // pred_region
    %vm87 = vcmask 523264
    %88 = vst.msk [vmem:[#allocation2] sm:$0xff] %vm87, 0.0
    %89 = vst.msk [vmem:[#allocation2 + $0x8] sm:$0xff] %vm87, 0.0
  $region17: #{decoder_layer_forward.12} parent=0 // pred_fallthru
    _
  %v90 = vld [vmem:[#allocation2] sm:$0xff]
  %v91 = vld [vmem:[#allocation2 + $0x8] sm:$0xff]
  %v92 = vadd.f32 %v90, %v77
  %v93 = vadd.f32 %v91, %v80
  %vm94 = vcmask 523264
  %95 = vst.msk [vmem:[#allocation2] sm:$0xff] %vm94, %v92
  %96 = vst.msk [vmem:[#allocation2 + $0x8] sm:$0xff] %vm94, %v93
  // Predicated region
  $region18: #{decoder_layer_forward.12} parent=0 // pred_check
    %p97 = pneg %p83
  $region19: #{decoder_layer_forward.12} parent=0 // pred_check_branch
    %99 = sbr.rel (%p97) target = $region21
  $region20: #{decoder_layer_forward.12} parent=0 // pred_region
    %v100 = vld [vmem:[#allocation2] sm:$0xff]
    %v101 = vld [vmem:[#allocation2 + $0x8] sm:$0xff]
    %v102 = vld [vmem:[%s2] sm:$0x1]
    %v104 = vlaneseq
    %v105 = vshrl.u32 %v104, 7
    %v106 = vsub.s32 0, %v105
    %v107 = vrot.slane %v102, %v106
    %v109 = vadd.f32 %v100, %v107
    %v110 = vadd.f32 %v101, %v107
    %v111 = vpack.c.bf16 %v110, %v109
    %v113 = vunpack.c.l.b16 %v111
    %v114 = vunpack.c.h.b16 %v111
    %v115 = vpack.c.b16 %v113, %v113
    %v116 = vpack.c.b16 %v114, %v114
    %vm119 = vcmask 519168
    %120 = vst.msk [vmem:[%s3] sm:$0xf] %vm119, %v115
    %121 = vst.msk [vmem:[%s3 + $0x4] sm:$0xf] %vm119, %v116
  $region21: #{decoder_layer_forward.12} parent=0 // pred_fallthru
    _
  // Predicated region
  $region22: #{decoder_layer_forward.12} parent=0 // pred_check
    _
  $region23: #{decoder_layer_forward.12} parent=0 // pred_check_branch
    %123 = sbr.rel (0) target = $region25
  $region24: #{decoder_layer_forward.12} parent=0 // pred_region
    _
  $region25: #{decoder_layer_forward.12} parent=0 // pred_fallthru
    _
  // Predicated region
  $region26: #{decoder_layer_forward.12} parent=0 // pred_check
    _
  $region27: #{decoder_layer_forward.12} parent=0 // pred_check_branch
    %125 = sbr.rel (0) target = $region29
  $region28: #{decoder_layer_forward.12} parent=0 // pred_region
    _
  $region29: #{decoder_layer_forward.12} parent=0 // pred_fallthru
    _

// kernel: decoder_layer_forward.14
$region0: #{decoder_layer_forward.14}
  #allocation0 [shape = 'u32[]', space=smem, size = 0x4, offset = 0x4, fixed_abs, tag = 'smem constant byte address 0x4 - core index']
  #allocation1 [shape = 'u32[144,128]{1,0:T(1,128)}', space=vmem, size = 0x12000, scoped, tag = 'internal scratch']
  %s0 = inlined_call_operand.vmem [shape: bf16[16,32], index: 0, kind: input, shape index: {}]
  %s1 = inlined_call_operand.vmem [shape: bf16[32,32], index: 1, kind: input, shape index: {}]
  %s2 = inlined_call_operand.vmem [shape: f32[1,32], index: 2, kind: input, shape index: {}]
  %s3 = inlined_call_operand.vmem [shape: f32[16,32], index: 3, kind: input, shape index: {}]
  %s4 = inlined_call_operand.vmem [shape: f32[16,32], index: 4, kind: output, shape index: {}]
  %s5 = sld [smem:[#allocation0]]
  $region30: #{decoder_layer_forward.14} parent=0
    _
  %s7 = ssub.s32 1, %s5
  %s8 = scalar_select 0, %s7, %s5
  // Predicated region
  $region2: #{decoder_layer_forward.14} parent=0 // pred_check
    _
  $region3: #{decoder_layer_forward.14} parent=0 // pred_check_branch
    %10 = sbr.rel (0) target = $region5
  $region4: #{decoder_layer_forward.14} parent=0 // pred_region
    _
  $region5: #{decoder_layer_forward.14} parent=0 // pred_fallthru
    _
  // Predicated region
  $region6: #{decoder_layer_forward.14} parent=0 // pred_check
    _
  $region7: #{decoder_layer_forward.14} parent=0 // pred_check_branch
    %12 = sbr.rel (0) target = $region9
  $region8: #{decoder_layer_forward.14} parent=0 // pred_region
    _
  $region9: #{decoder_layer_forward.14} parent=0 // pred_fallthru
    _
  // Predicated region
  $region10: #{decoder_layer_forward.14} parent=0 // pred_check
    _
  $region11: #{decoder_layer_forward.14} parent=0 // pred_check_branch
    %14 = sbr.rel (0) target = $region13
  $region12: #{decoder_layer_forward.14} parent=0 // pred_region
    _
  $region13: #{decoder_layer_forward.14} parent=0 // pred_fallthru
    _
  // Predicated region
  $region14: #{decoder_layer_forward.14} parent=0 // pred_check
    _
  $region15: #{decoder_layer_forward.14} parent=0 // pred_check_branch
    %16 = sbr.rel (0) target = $region17
  $region16: #{decoder_layer_forward.14} parent=0 // pred_region
    _
  $region17: #{decoder_layer_forward.14} parent=0 // pred_fallthru
    _
  %v18 = vld [vmem:[%s0] sm:$0xf]
  %v19 = vld [vmem:[%s0 + $0x4] sm:$0xf]
  %v20 = vld [vmem:[%s1] sm:$0xf]
  %v21 = vld [vmem:[%s1 + $0x4] sm:$0xf]
  %v22 = vld [vmem:[%s1 + $0x8] sm:$0xf]
  %v23 = vld [vmem:[%s1 + $0xc] sm:$0xf]
  %v26 = vunpack.c.l.b16 %v18
  %v27 = vunpack.c.l.b16 %v19
  %v28 = vpack.c.b16 %v27, %v26
  %v33 = vunpack.c.l.b16 %v20
  %v34 = vunpack.c.l.b16 %v21
  %v35 = vunpack.c.l.b16 %v22
  %v36 = vunpack.c.l.b16 %v23
  %v37 = vpack.c.b16 %v34, %v33
  %v38 = vpack.c.b16 %v36, %v35
  %vm41 = vcmask 261120
  %v43 = vsel %vm41, %v28, 0
  %45 = vmatprep.subr.bf16.mxu0 0
  %46 = vmatpush1.bf16.msra.mxu0 0
  %47 = vmatprep.subr.bf16.mxu0 0
  %48 = vmatpush1.bf16.msra.mxu0 0
  %49 = vmatprep.subr.bf16.mxu0 0
  %50 = vmatpush1.bf16.msra.mxu0 0
  %51 = vmatprep.subr.bf16.mxu0 0
  %52 = vmatpush1.bf16.msra.mxu0 0
  %53 = vmatprep.subr.bf16.mxu0 0
  %54 = vmatpush1.bf16.msra.mxu0 0
  %55 = vmatprep.subr.bf16.mxu0 0
  %56 = vmatpush1.bf16.msra.mxu0 0
  %57 = vmatprep.subr.bf16.mxu0 0
  %58 = vmatpush1.bf16.msra.mxu0 %v38
  %59 = vmatprep.subr.bf16.mxu0 0
  %60 = vmatpush1.bf16.msra.mxu0 %v37
  %61 = vmatprep.subr.bf16.mxu0 0
  %62 = vmatpush2.bf16.msra.mxu0 0
  %63 = vmatprep.subr.bf16.mxu0 0
  %64 = vmatpush2.bf16.msra.mxu0 0
  %65 = vmatprep.subr.bf16.mxu0 0
  %66 = vmatpush2.bf16.msra.mxu0 0
  %67 = vmatprep.subr.bf16.mxu0 0
  %68 = vmatpush2.bf16.msra.mxu0 0
  %69 = vmatprep.subr.bf16.mxu0 0
  %70 = vmatpush2.bf16.msra.mxu0 0
  %71 = vmatprep.subr.bf16.mxu0 0
  %72 = vmatpush2.bf16.msra.mxu0 0
  %73 = vmatprep.subr.bf16.mxu0 0
  %74 = vmatpush2.bf16.msra.mxu0 0
  %75 = vmatprep.subr.bf16.mxu0 0
  %76 = vmatpush2.bf16.msra.mxu0 0
  %77 = vmatprep.mubr.bf16.mxu0 0
  %78 = vmatmul.mubr.bf16.gmra.mxu0 %v43
  %v79 = vpop.f32.mrf.mxu0
  %v80 = vadd.f32 0.0, %v79
  %v81 = vpop.f32.mrf.mxu0
  %v82 = vpop.f32.mrf.mxu0
  %v83 = vadd.f32 0.0, %v82
  %v84 = vpop.f32.mrf.mxu0
  %85 = vdwg.mxu0
  %p86 = scmp.eq.s32.totalorder 0, 0
  // Predicated region
  $region18: #{decoder_layer_forward.14} parent=0 // pred_check
    %p87 = pneg %p86
  $region19: #{decoder_layer_forward.14} parent=0 // pred_check_branch
    %89 = sbr.rel (%p87) target = $region21
  $region20: #{decoder_layer_forward.14} parent=0 // pred_region
    %v90 = vld [vmem:[%s2] sm:$0x1]
    %v92 = vlaneseq
    %v93 = vshrl.u32 %v92, 7
    %v94 = vsub.s32 0, %v93
    %v95 = vrot.slane %v90, %v94
    %v97 = vadd.f32 %v95, 0.0
    %v98 = vld [vmem:[%s3] sm:$0xff]
    %v99 = vld [vmem:[%s3 + $0x8] sm:$0xff]
    %v100 = vadd.f32 %v97, %v98
    %v101 = vadd.f32 %v97, %v99
    %102 = vst.msk [vmem:[%s4] sm:$0xff] %vm41, %v100
    %103 = vst.msk [vmem:[%s4 + $0x8] sm:$0xff] %vm41, %v101
  $region21: #{decoder_layer_forward.14} parent=0 // pred_fallthru
    _
  %v104 = vld [vmem:[%s4] sm:$0xff]
  %v105 = vld [vmem:[%s4 + $0x8] sm:$0xff]
  %v106 = vadd.f32 %v104, %v80
  %v107 = vadd.f32 %v105, %v83
  %108 = vst.msk [vmem:[%s4] sm:$0xff] %vm41, %v106
  %109 = vst.msk [vmem:[%s4 + $0x8] sm:$0xff] %vm41, %v107
  // Predicated region
  $region22: #{decoder_layer_forward.14} parent=0 // pred_check
    _
  $region23: #{decoder_layer_forward.14} parent=0 // pred_check_branch
    %111 = sbr.rel (0) target = $region25
  $region24: #{decoder_layer_forward.14} parent=0 // pred_region
    _
  $region25: #{decoder_layer_forward.14} parent=0 // pred_fallthru
    _
  // Predicated region
  $region26: #{decoder_layer_forward.14} parent=0 // pred_check
    _
  $region27: #{decoder_layer_forward.14} parent=0 // pred_check_branch
    %113 = sbr.rel (0) target = $region29
  $region28: #{decoder_layer_forward.14} parent=0 // pred_region
    _
  $region29: #{decoder_layer_forward.14} parent=0 // pred_fallthru
    _

// kernel: decoder_layer_forward.16
$region0: #{decoder_layer_forward.16}
  #allocation0 [shape = 'u32[]', space=smem, size = 0x4, offset = 0x4, fixed_abs, tag = 'smem constant byte address 0x4 - core index']
  #allocation1 [shape = 'u32[144,128]{1,0:T(1,128)}', space=vmem, size = 0x12000, scoped, tag = 'internal scratch']
  #allocation2 [shape = 'f32[16,32]{1,0:T(8,128)}', space=vmem, size = 0x2000, scoped, tag = 'scratch operand']
  %s0 = inlined_call_operand.vmem [shape: bf16[16,32], index: 0, kind: input, shape index: {}]
  %s1 = inlined_call_operand.vmem [shape: bf16[32,32], index: 1, kind: input, shape index: {}]
  %s2 = inlined_call_operand.vmem [shape: f32[1,32], index: 2, kind: input, shape index: {}]
  %s3 = inlined_call_operand.vmem [shape: bf16[16,32], index: 3, kind: output, shape index: {}]
  %s4 = sld [smem:[#allocation0]]
  $region30: #{decoder_layer_forward.16} parent=0
    _
  %s6 = ssub.s32 1, %s4
  %s7 = scalar_select 0, %s6, %s4
  // Predicated region
  $region2: #{decoder_layer_forward.16} parent=0 // pred_check
    _
  $region3: #{decoder_layer_forward.16} parent=0 // pred_check_branch
    %9 = sbr.rel (0) target = $region5
  $region4: #{decoder_layer_forward.16} parent=0 // pred_region
    _
  $region5: #{decoder_layer_forward.16} parent=0 // pred_fallthru
    _
  // Predicated region
  $region6: #{decoder_layer_forward.16} parent=0 // pred_check
    _
  $region7: #{decoder_layer_forward.16} parent=0 // pred_check_branch
    %11 = sbr.rel (0) target = $region9
  $region8: #{decoder_layer_forward.16} parent=0 // pred_region
    _
  $region9: #{decoder_layer_forward.16} parent=0 // pred_fallthru
    _
  // Predicated region
  $region10: #{decoder_layer_forward.16} parent=0 // pred_check
    _
  $region11: #{decoder_layer_forward.16} parent=0 // pred_check_branch
    %13 = sbr.rel (0) target = $region13
  $region12: #{decoder_layer_forward.16} parent=0 // pred_region
    _
  $region13: #{decoder_layer_forward.16} parent=0 // pred_fallthru
    _
  %v15 = vld [vmem:[%s0] sm:$0xf]
  %v16 = vld [vmem:[%s0 + $0x4] sm:$0xf]
  %v17 = vld [vmem:[%s1] sm:$0xf]
  %v18 = vld [vmem:[%s1 + $0x4] sm:$0xf]
  %v19 = vld [vmem:[%s1 + $0x8] sm:$0xf]
  %v20 = vld [vmem:[%s1 + $0xc] sm:$0xf]
  %v23 = vunpack.c.l.b16 %v15
  %v24 = vunpack.c.l.b16 %v16
  %v25 = vpack.c.b16 %v24, %v23
  %v30 = vunpack.c.l.b16 %v17
  %v31 = vunpack.c.l.b16 %v18
  %v32 = vunpack.c.l.b16 %v19
  %v33 = vunpack.c.l.b16 %v20
  %v34 = vpack.c.b16 %v31, %v30
  %v35 = vpack.c.b16 %v33, %v32
  %vm38 = vcmask 261120
  %v40 = vsel %vm38, %v25, 0
  %42 = vmatprep.subr.bf16.mxu0 0
  %43 = vmatpush1.bf16.msra.mxu0 0
  %44 = vmatprep.subr.bf16.mxu0 0
  %45 = vmatpush1.bf16.msra.mxu0 0
  %46 = vmatprep.subr.bf16.mxu0 0
  %47 = vmatpush1.bf16.msra.mxu0 0
  %48 = vmatprep.subr.bf16.mxu0 0
  %49 = vmatpush1.bf16.msra.mxu0 0
  %50 = vmatprep.subr.bf16.mxu0 0
  %51 = vmatpush1.bf16.msra.mxu0 0
  %52 = vmatprep.subr.bf16.mxu0 0
  %53 = vmatpush1.bf16.msra.mxu0 0
  %54 = vmatprep.subr.bf16.mxu0 0
  %55 = vmatpush1.bf16.msra.mxu0 %v35
  %56 = vmatprep.subr.bf16.mxu0 0
  %57 = vmatpush1.bf16.msra.mxu0 %v34
  %58 = vmatprep.subr.bf16.mxu0 0
  %59 = vmatpush2.bf16.msra.mxu0 0
  %60 = vmatprep.subr.bf16.mxu0 0
  %61 = vmatpush2.bf16.msra.mxu0 0
  %62 = vmatprep.subr.bf16.mxu0 0
  %63 = vmatpush2.bf16.msra.mxu0 0
  %64 = vmatprep.subr.bf16.mxu0 0
  %65 = vmatpush2.bf16.msra.mxu0 0
  %66 = vmatprep.subr.bf16.mxu0 0
  %67 = vmatpush2.bf16.msra.mxu0 0
  %68 = vmatprep.subr.bf16.mxu0 0
  %69 = vmatpush2.bf16.msra.mxu0 0
  %70 = vmatprep.subr.bf16.mxu0 0
  %71 = vmatpush2.bf16.msra.mxu0 0
  %72 = vmatprep.subr.bf16.mxu0 0
  %73 = vmatpush2.bf16.msra.mxu0 0
  %74 = vmatprep.mubr.bf16.mxu0 0
  %75 = vmatmul.mubr.bf16.gmra.mxu0 %v40
  %v76 = vpop.f32.mrf.mxu0
  %v77 = vadd.f32 0.0, %v76
  %v78 = vpop.f32.mrf.mxu0
  %v79 = vpop.f32.mrf.mxu0
  %v80 = vadd.f32 0.0, %v79
  %v81 = vpop.f32.mrf.mxu0
  %82 = vdwg.mxu0
  %p83 = scmp.eq.s32.totalorder 0, 0
  // Predicated region
  $region14: #{decoder_layer_forward.16} parent=0 // pred_check
    %p84 = pneg %p83
  $region15: #{decoder_layer_forward.16} parent=0 // pred_check_branch
    %86 = sbr.rel (%p84) target = $region17
  $region16: #{decoder_layer_forward.16} parent=0 // pred_region
    %87 = vst.msk [vmem:[#allocation2] sm:$0xff] %vm38, 0.0
    %88 = vst.msk [vmem:[#allocation2 + $0x8] sm:$0xff] %vm38, 0.0
  $region17: #{decoder_layer_forward.16} parent=0 // pred_fallthru
    _
  %v89 = vld [vmem:[#allocation2] sm:$0xff]
  %v90 = vld [vmem:[#allocation2 + $0x8] sm:$0xff]
  %v91 = vadd.f32 %v89, %v77
  %v92 = vadd.f32 %v90, %v80
  %93 = vst.msk [vmem:[#allocation2] sm:$0xff] %vm38, %v91
  %94 = vst.msk [vmem:[#allocation2 + $0x8] sm:$0xff] %vm38, %v92
  // Predicated region
  $region18: #{decoder_layer_forward.16} parent=0 // pred_check
    %p95 = pneg %p83
  $region19: #{decoder_layer_forward.16} parent=0 // pred_check_branch
    %97 = sbr.rel (%p95) target = $region21
  $region20: #{decoder_layer_forward.16} parent=0 // pred_region
    %v98 = vld [vmem:[#allocation2] sm:$0xff]
    %v99 = vld [vmem:[#allocation2 + $0x8] sm:$0xff]
    %v100 = vld [vmem:[%s2] sm:$0x1]
    %v102 = vlaneseq
    %v103 = vshrl.u32 %v102, 7
    %v104 = vsub.s32 0, %v103
    %v105 = vrot.slane %v100, %v104
    %v107 = vadd.f32 %v98, %v105
    %v108 = vadd.f32 %v99, %v105
    %v109 = vpack.c.bf16 %v108, %v107
    %v111 = vunpack.c.l.b16 %v109
    %v112 = vunpack.c.h.b16 %v109
    %v113 = vpack.c.b16 %v111, %v111
    %v114 = vpack.c.b16 %v112, %v112
    %vm117 = vcmask 257024
    %118 = vst.msk [vmem:[%s3] sm:$0xf] %vm117, %v113
    %119 = vst.msk [vmem:[%s3 + $0x4] sm:$0xf] %vm117, %v114
  $region21: #{decoder_layer_forward.16} parent=0 // pred_fallthru
    _
  // Predicated region
  $region22: #{decoder_layer_forward.16} parent=0 // pred_check
    _
  $region23: #{decoder_layer_forward.16} parent=0 // pred_check_branch
    %121 = sbr.rel (0) target = $region25
  $region24: #{decoder_layer_forward.16} parent=0 // pred_region
    _
  $region25: #{decoder_layer_forward.16} parent=0 // pred_fallthru
    _
  // Predicated region
  $region26: #{decoder_layer_forward.16} parent=0 // pred_check
    _
  $region27: #{decoder_layer_forward.16} parent=0 // pred_check_branch
    %123 = sbr.rel (0) target = $region29
  $region28: #{decoder_layer_forward.16} parent=0 // pred_region
    _
  $region29: #{decoder_layer_forward.16} parent=0 // pred_fallthru
    _

// kernel: decoder_layer_forward.13
$region0: #{decoder_layer_forward.13}
  #allocation0 [shape = 'u32[]', space=smem, size = 0x4, offset = 0x4, fixed_abs, tag = 'smem constant byte address 0x4 - core index']
  #allocation1 [shape = 'u32[144,128]{1,0:T(1,128)}', space=vmem, size = 0x12000, scoped, tag = 'internal scratch']
  #allocation2 [shape = 'f32[16,1]{1,0:T(8,128)}', space=vmem, size = 0x2000, scoped, tag = 'scratch operand']
  #allocation3 [shape = 'f32[16,1]{1,0:T(8,128)}', space=vmem, size = 0x2000, scoped, tag = 'scratch operand']
  #allocation4 [shape = 'f32[16,8]{1,0:T(8,128)}', space=vmem, size = 0x2000, scoped, tag = 'scratch operand']
  %s0 = inlined_call_operand.vmem [shape: bf16[2,2,2,8,8], index: 0, kind: input, shape index: {}]
  %s1 = inlined_call_operand.vmem [shape: bf16[2,2,8,8], index: 1, kind: input, shape index: {}]
  %s2 = inlined_call_operand.vmem [shape: bf16[2,2,8,8], index: 2, kind: input, shape index: {}]
  %s3 = inlined_call_operand.vmem [shape: bf16[2,2,2,8,8], index: 3, kind: output, shape index: {}]
  %s4 = sld [smem:[#allocation0]]
  $region53: #{decoder_layer_forward.13} parent=0
    _
  %s6 = ssub.s32 1, %s4
  %s7 = scalar_select 0, %s6, %s4
  loop: start=0, step=1, limit=6
  $region2: #{decoder_layer_forward.13} parent=0 // loop_pre_header
    _
  $region3: #{decoder_layer_forward.13} parent=0 // loop_header
    %s9 = sphi 0, %s13
    %p10 = scmp.ge.s32.totalorder %s9, 6
    %s16 = sphi 0, %s42
    %s17 = sphi 0, %s38
    %s18 = sphi 0, %s34
    %s19 = sphi 0, %s30
    %s20 = sphi 0, %s16
    %s21 = sphi 0, %s17
    %s22 = sphi 0, %s18
    %s23 = sphi 0, %s19
    %s24 = sphi 0, %s20
    %s25 = sphi 0, %s21
    %s26 = sphi 0, %s22
    %s27 = sphi 0, %s23
    %s49 = sphi 0, %s51
    %s52 = sphi 0, %s49
    %s53 = sphi 0, %s52
    %s69 = sphi 0, %s53
    %s79 = sphi 0, %s81
    %s82 = sphi 0, %s79
    %s83 = sphi 0, %s82
    %s99 = sphi 0, %s83
    %s109 = sphi 0, %s111
    %s112 = sphi 0, %s109
    %s113 = sphi 0, %s112
    %s129 = sphi 0, %s113
    %s139 = sphi 0, %s141
    %s142 = sphi 0, %s139
    %s143 = sphi 0, %s142
    %s159 = sphi 0, %s143
  $region4: #{decoder_layer_forward.13} parent=0 // loop_header_branch
    %12 = sbr.rel (%p10) target = $region8
  $region5: #{decoder_layer_forward.13} parent=0 // loop_body
    %s14 = ssub.s32 %s9, 1
    %s15 = ssub.s32 %s9, 2
    %s28 = sadd.s32 1, %s19
    %p29 = scmp.ge.s32.totalorder %s28, 1
    %s30 = scalar_select %p29, 0, %s28
    %s31 = sadd.s32 1, %s18
    %s32 = scalar_select %p29, %s31, %s18
    %p33 = scmp.ge.s32.totalorder %s32, 1
    %s34 = scalar_select %p33, 0, %s32
    %s35 = sadd.s32 1, %s17
    %s36 = scalar_select %p33, %s35, %s17
    %p37 = scmp.ge.s32.totalorder %s36, 2
    %s38 = scalar_select %p37, 0, %s36
    %s39 = sadd.s32 1, %s16
    %s40 = scalar_select %p37, %s39, %s16
    %p41 = scmp.ge.s32.totalorder %s40, 2
    %s42 = scalar_select %p41, 0, %s40
    %s43 = ssub.s32 %s16, %s42
    %s44 = ssub.s32 %s17, %s38
    %s45 = sor.u32 %s43, %s44
    %s46 = ssub.s32 %s18, %s34
    %s47 = sor.u32 %s45, %s46
    %p48 = scmp.eq.s32.totalorder %s47, 0
    %s50 = sadd.s32 %s49, 1
    %s51 = scalar_select %p48, %s49, %s50
    %p54 = pneg %p48
    %p55 = scmp.eq.s32.totalorder %s9, 3
    %p56 = por %p54, %p55
    %p57 = scmp.ne.s32.totalorder %s49, %s52
    %p58 = scmp.eq.s32.totalorder %s9, 0
    %p59 = por %p57, %p58
    %p60 = scmp.ne.s32.totalorder %s49, %s52
    %p61 = scmp.eq.s32.totalorder %s14, 3
    %p62 = por %p60, %p61
    %p63 = scmp.ne.s32.totalorder %s52, %s53
    %p64 = scmp.eq.s32.totalorder %s14, 0
    %p65 = por %p63, %p64
    %p66 = scmp.ne.s32.totalorder %s52, %s53
    %p67 = scmp.eq.s32.totalorder %s15, 3
    %p68 = por %p66, %p67
    %p70 = scmp.ne.s32.totalorder %s53, %s69
    %p71 = scmp.eq.s32.totalorder %s15, 0
    %p72 = por %p70, %p71
    %s73 = ssub.s32 %s16, %s42
    %s74 = ssub.s32 %s17, %s38
    %s75 = sor.u32 %s73, %s74
    %s76 = ssub.s32 %s19, %s30
    %s77 = sor.u32 %s75, %s76
    %p78 = scmp.eq.s32.totalorder %s77, 0
    %s80 = sadd.s32 %s79, 1
    %s81 = scalar_select %p78, %s79, %s80
    %p84 = pneg %p78
    %p85 = scmp.eq.s32.totalorder %s9, 3
    %p86 = por %p84, %p85
    %p87 = scmp.ne.s32.totalorder %s79, %s82
    %p88 = scmp.eq.s32.totalorder %s9, 0
    %p89 = por %p87, %p88
    %p90 = scmp.ne.s32.totalorder %s79, %s82
    %p91 = scmp.eq.s32.totalorder %s14, 3
    %p92 = por %p90, %p91
    %p93 = scmp.ne.s32.totalorder %s82, %s83
    %p94 = scmp.eq.s32.totalorder %s14, 0
    %p95 = por %p93, %p94
    %p96 = scmp.ne.s32.totalorder %s82, %s83
    %p97 = scmp.eq.s32.totalorder %s15, 3
    %p98 = por %p96, %p97
    %p100 = scmp.ne.s32.totalorder %s83, %s99
    %p101 = scmp.eq.s32.totalorder %s15, 0
    %p102 = por %p100, %p101
    %s103 = ssub.s32 %s16, %s42
    %s104 = ssub.s32 %s17, %s38
    %s105 = sor.u32 %s103, %s104
    %s106 = ssub.s32 %s19, %s30
    %s107 = sor.u32 %s105, %s106
    %p108 = scmp.eq.s32.totalorder %s107, 0
    %s110 = sadd.s32 %s109, 1
    %s111 = scalar_select %p108, %s109, %s110
    %p114 = pneg %p108
    %p115 = scmp.eq.s32.totalorder %s9, 3
    %p116 = por %p114, %p115
    %p117 = scmp.ne.s32.totalorder %s109, %s112
    %p118 = scmp.eq.s32.totalorder %s9, 0
    %p119 = por %p117, %p118
    %p120 = scmp.ne.s32.totalorder %s109, %s112
    %p121 = scmp.eq.s32.totalorder %s14, 3
    %p122 = por %p120, %p121
    %p123 = scmp.ne.s32.totalorder %s112, %s113
    %p124 = scmp.eq.s32.totalorder %s14, 0
    %p125 = por %p123, %p124
    %p126 = scmp.ne.s32.totalorder %s112, %s113
    %p127 = scmp.eq.s32.totalorder %s15, 3
    %p128 = por %p126, %p127
    %p130 = scmp.ne.s32.totalorder %s113, %s129
    %p131 = scmp.eq.s32.totalorder %s15, 0
    %p132 = por %p130, %p131
    %s133 = ssub.s32 %s16, %s42
    %s134 = ssub.s32 %s17, %s38
    %s135 = sor.u32 %s133, %s134
    %s136 = ssub.s32 %s18, %s34
    %s137 = sor.u32 %s135, %s136
    %p138 = scmp.eq.s32.totalorder %s137, 0
    %s140 = sadd.s32 %s139, 1
    %s141 = scalar_select %p138, %s139, %s140
    %p144 = pneg %p138
    %p145 = scmp.eq.s32.totalorder %s9, 3
    %p146 = por %p144, %p145
    %p147 = scmp.ne.s32.totalorder %s139, %s142
    %p148 = scmp.eq.s32.totalorder %s9, 0
    %p149 = por %p147, %p148
    %p150 = scmp.ne.s32.totalorder %s139, %s142
    %p151 = scmp.eq.s32.totalorder %s14, 3
    %p152 = por %p150, %p151
    %p153 = scmp.ne.s32.totalorder %s142, %s143
    %p154 = scmp.eq.s32.totalorder %s14, 0
    %p155 = por %p153, %p154
    %p156 = scmp.ne.s32.totalorder %s142, %s143
    %p157 = scmp.eq.s32.totalorder %s15, 3
    %p158 = por %p156, %p157
    %p160 = scmp.ne.s32.totalorder %s143, %s159
    %p161 = scmp.eq.s32.totalorder %s15, 0
    %p162 = por %p160, %p161
    %p163 = scmp.le.s32.totalorder 1, %s9
    %p164 = scmp.lt.s32.totalorder %s9, 5
    %p165 = pnand %p163, %p164
    %p166 = pneg %p165
    // Predicated region
    $region9: #{decoder_layer_forward.13} parent=5 // pred_check
      _
    $region10: #{decoder_layer_forward.13} parent=5 // pred_check_branch
      %168 = sbr.rel (%p165) target = $region12
    $region11: #{decoder_layer_forward.13} parent=5 // pred_region
      %s169 = ssub.s32 %s9, 1
    $region12: #{decoder_layer_forward.13} parent=5 // pred_fallthru
      _
    %p170 = scmp.lt.s32.totalorder %s9, 4
    // Predicated region
    $region13: #{decoder_layer_forward.13} parent=5 // pred_check
      %p171 = pneg %p170
    $region14: #{decoder_layer_forward.13} parent=5 // pred_check_branch
      %173 = sbr.rel (%p171) target = $region16
    $region15: #{decoder_layer_forward.13} parent=5 // pred_region
      // Predicated region
      $region17: #{decoder_layer_forward.13} parent=15 // pred_check
        %p174 = pneg %p59
      $region18: #{decoder_layer_forward.13} parent=15 // pred_check_branch
        %176 = sbr.rel (%p174) target = $region20
      $region19: #{decoder_layer_forward.13} parent=15 // pred_region
        %p177 = scmp.lt.s32.totalorder %s16, 1
        %s178 = scalar_select %p177, %s16, 1
        %p179 = scmp.lt.s32.totalorder %s17, 1
        %s180 = scalar_select %p179, %s17, 1
        %p181 = scmp.lt.s32.totalorder %s18, 0
        %s182 = scalar_select %p181, %s18, 0
        %s183 = smul.addr %s180, 2
        %s184 = sadd.s32 %s182, %s183
        %s185 = smul.addr %s178, 4
        %s186 = sadd.s32 %s184, %s185
        %s187 = smul.addr %s186, 4
        %s188 = scalar_lea.vmem %s0, %s187
      $region20: #{decoder_layer_forward.13} parent=15 // pred_fallthru
        _
      // Predicated region
      $region21: #{decoder_layer_forward.13} parent=15 // pred_check
        %p189 = pneg %p89
      $region22: #{decoder_layer_forward.13} parent=15 // pred_check_branch
        %191 = sbr.rel (%p189) target = $region24
      $region23: #{decoder_layer_forward.13} parent=15 // pred_region
        %p192 = scmp.lt.s32.totalorder %s16, 1
        %s193 = scalar_select %p192, %s16, 1
        %p194 = scmp.lt.s32.totalorder %s17, 1
        %s195 = scalar_select %p194, %s17, 1
        %p196 = scmp.lt.s32.totalorder %s19, 0
        %s197 = scalar_select %p196, %s19, 0
        %s198 = sadd.s32 %s197, %s195
        %s199 = smul.addr %s193, 2
        %s200 = sadd.s32 %s198, %s199
        %s201 = smul.addr %s200, 4
        %s202 = scalar_lea.vmem %s1, %s201
      $region24: #{decoder_layer_forward.13} parent=15 // pred_fallthru
        _
      // Predicated region
      $region25: #{decoder_layer_forward.13} parent=15 // pred_check
        %p203 = pneg %p119
      $region26: #{decoder_layer_forward.13} parent=15 // pred_check_branch
        %205 = sbr.rel (%p203) target = $region28
      $region27: #{decoder_layer_forward.13} parent=15 // pred_region
        %p206 = scmp.lt.s32.totalorder %s16, 1
        %s207 = scalar_select %p206, %s16, 1
        %p208 = scmp.lt.s32.totalorder %s17, 1
        %s209 = scalar_select %p208, %s17, 1
        %p210 = scmp.lt.s32.totalorder %s19, 0
        %s211 = scalar_select %p210, %s19, 0
        %s212 = sadd.s32 %s211, %s209
        %s213 = smul.addr %s207, 2
        %s214 = sadd.s32 %s212, %s213
        %s215 = smul.addr %s214, 4
        %s216 = scalar_lea.vmem %s2, %s215
      $region28: #{decoder_layer_forward.13} parent=15 // pred_fallthru
        _
    $region16: #{decoder_layer_forward.13} parent=5 // pred_fallthru
      _
    %p217 = scmp.le.s32.totalorder 1, %s9
    %p218 = scmp.lt.s32.totalorder %s9, 5
    %p219 = pnand %p217, %p218
    %p220 = pneg %p219
    // Predicated region
    $region29: #{decoder_layer_forward.13} parent=5 // pred_check
      _
    $region30: #{decoder_layer_forward.13} parent=5 // pred_check_branch
      %222 = sbr.rel (%p219) target = $region32
    $region31: #{decoder_layer_forward.13} parent=5 // pred_region
      %s223 = ssub.s32 %s9, 1
      %p224 = scmp.lt.s32.totalorder %s20, 1
      %s225 = scalar_select %p224, %s20, 1
      %p226 = scmp.lt.s32.totalorder %s21, 1
      %s227 = scalar_select %p226, %s21, 1
      %p228 = scmp.lt.s32.totalorder %s22, 0
      %s229 = scalar_select %p228, %s22, 0
      %s230 = smul.addr %s227, 2
      %s231 = sadd.s32 %s229, %s230
      %s232 = smul.addr %s225, 4
      %s233 = sadd.s32 %s231, %s232
      %s234 = smul.addr %s233, 4
      %s235 = scalar_lea.vmem %s0, %s234
      %p236 = pneg %p65
      %p237 = pneg %p62
      %p238 = scmp.lt.s32.totalorder %s20, 1
      %s239 = scalar_select %p238, %s20, 1
      %p240 = scmp.lt.s32.totalorder %s21, 1
      %s241 = scalar_select %p240, %s21, 1
      %p242 = scmp.lt.s32.totalorder %s23, 0
      %s243 = scalar_select %p242, %s23, 0
      %s244 = sadd.s32 %s243, %s241
      %s245 = smul.addr %s239, 2
      %s246 = sadd.s32 %s244, %s245
      %s247 = smul.addr %s246, 4
      %s248 = scalar_lea.vmem %s1, %s247
      %p249 = pneg %p95
      %p250 = pneg %p92
      %p251 = scmp.lt.s32.totalorder %s20, 1
      %s252 = scalar_select %p251, %s20, 1
      %p253 = scmp.lt.s32.totalorder %s21, 1
      %s254 = scalar_select %p253, %s21, 1
      %p255 = scmp.lt.s32.totalorder %s23, 0
      %s256 = scalar_select %p255, %s23, 0
      %s257 = sadd.s32 %s256, %s254
      %s258 = smul.addr %s252, 2
      %s259 = sadd.s32 %s257, %s258
      %s260 = smul.addr %s259, 4
      %s261 = scalar_lea.vmem %s2, %s260
      %p262 = pneg %p125
      %p263 = pneg %p122
      %p264 = pneg %p155
      %p265 = pneg %p152
      %p266 = scmp.lt.s32.totalorder %s20, 1
      %s267 = scalar_select %p266, %s20, 1
      %p268 = scmp.lt.s32.totalorder %s21, 1
      %s269 = scalar_select %p268, %s21, 1
      %p270 = scmp.lt.s32.totalorder %s22, 0
      %s271 = scalar_select %p270, %s22, 0
      %s272 = smul.addr %s269, 2
      %s273 = sadd.s32 %s271, %s272
      %s274 = smul.addr %s267, 4
      %s275 = sadd.s32 %s273, %s274
      %s276 = smul.addr %s275, 4
      %s277 = scalar_lea.vmem %s3, %s276
      %p278 = scmp.lt.s32.totalorder %s20, 1
      %s279 = scalar_select %p278, %s20, 1
      %p280 = scmp.lt.s32.totalorder %s21, 1
      %s281 = scalar_select %p280, %s21, 1
      %p282 = scmp.lt.s32.totalorder %s22, 0
      %s283 = scalar_select %p282, %s22, 0
      %s284 = smul.addr %s281, 2
      %s285 = sadd.s32 %s283, %s284
      %s286 = smul.addr %s279, 4
      %s287 = sadd.s32 %s285, %s286
      %s288 = smul.addr %s287, 4
      %s289 = scalar_lea.vmem %s0, %s288
      %p290 = scmp.lt.s32.totalorder %s20, 1
      %s291 = scalar_select %p290, %s20, 1
      %p292 = scmp.lt.s32.totalorder %s21, 1
      %s293 = scalar_select %p292, %s21, 1
      %p294 = scmp.lt.s32.totalorder %s23, 0
      %s295 = scalar_select %p294, %s23, 0
      %s296 = sadd.s32 %s295, %s293
      %s297 = smul.addr %s291, 2
      %s298 = sadd.s32 %s296, %s297
      %s299 = smul.addr %s298, 4
      %s300 = scalar_lea.vmem %s1, %s299
      %p301 = scmp.lt.s32.totalorder %s20, 1
      %s302 = scalar_select %p301, %s20, 1
      %p303 = scmp.lt.s32.totalorder %s21, 1
      %s304 = scalar_select %p303, %s21, 1
      %p305 = scmp.lt.s32.totalorder %s23, 0
      %s306 = scalar_select %p305, %s23, 0
      %s307 = sadd.s32 %s306, %s304
      %s308 = smul.addr %s302, 2
      %s309 = sadd.s32 %s307, %s308
      %s310 = smul.addr %s309, 4
      %s311 = scalar_lea.vmem %s2, %s310
      %p312 = scmp.lt.s32.totalorder %s20, 1
      %s313 = scalar_select %p312, %s20, 1
      %p314 = scmp.lt.s32.totalorder %s21, 1
      %s315 = scalar_select %p314, %s21, 1
      %p316 = scmp.lt.s32.totalorder %s22, 0
      %s317 = scalar_select %p316, %s22, 0
      %s318 = smul.addr %s315, 2
      %s319 = sadd.s32 %s317, %s318
      %s320 = smul.addr %s313, 4
      %s321 = sadd.s32 %s319, %s320
      %s322 = smul.addr %s321, 4
      %s323 = scalar_lea.vmem %s3, %s322
      %p325 = scmp.eq.s32.totalorder %s23, 0
      // Predicated region
      $region33: #{decoder_layer_forward.13} parent=31 // pred_check
        %p326 = pneg %p325
      $region34: #{decoder_layer_forward.13} parent=31 // pred_check_branch
        %328 = sbr.rel (%p326) target = $region36
      $region35: #{decoder_layer_forward.13} parent=31 // pred_region
        %vm329 = vcmask 7168
        %330 = vst.msk [vmem:[#allocation2] sm:$0xff] %vm329, -inf
        %331 = vst.msk [vmem:[#allocation2 + $0x8] sm:$0xff] %vm329, -inf
        %332 = vst.msk [vmem:[#allocation3] sm:$0xff] %vm329, 0.0
        %333 = vst.msk [vmem:[#allocation3 + $0x8] sm:$0xff] %vm329, 0.0
        %vm334 = vcmask 64512
        %335 = vst.msk [vmem:[#allocation4] sm:$0xff] %vm334, 0.0
        %336 = vst.msk [vmem:[#allocation4 + $0x8] sm:$0xff] %vm334, 0.0
      $region36: #{decoder_layer_forward.13} parent=31 // pred_fallthru
        _
      %v337 = vld [vmem:[%s289] sm:$0xf]
      %v338 = vld [vmem:[%s289 + $0x4] sm:$0xf]
      %v339 = vld [vmem:[%s300] sm:$0xf]
      %v342 = vunpack.c.l.b16 %v337
      %v343 = vunpack.c.l.b16 %v338
      %v344 = vpack.c.b16 %v343, %v342
      %vm345 = vcmask 64512
      %v347 = vsel %vm345, %v344, 0
      %v350 = vsel %vm345, %v339, 0
      %352 = vmatprep.subr.bf16.mxu0 0
      %353 = vmatpush1.bf16.xpose.msra.mxu0 0
      %354 = vmatprep.subr.bf16.mxu0 0
      %355 = vmatpush1.bf16.xpose.msra.mxu0 0
      %356 = vmatprep.subr.bf16.mxu0 0
      %357 = vmatpush1.bf16.xpose.msra.mxu0 0
      %358 = vmatprep.subr.bf16.mxu0 0
      %359 = vmatpush1.bf16.xpose.msra.mxu0 0
      %360 = vmatprep.subr.bf16.mxu0 0
      %361 = vmatpush1.bf16.xpose.msra.mxu0 0
      %362 = vmatprep.subr.bf16.mxu0 0
      %363 = vmatpush1.bf16.xpose.msra.mxu0 0
      %364 = vmatprep.subr.bf16.mxu0 0
      %365 = vmatpush1.bf16.xpose.msra.mxu0 0
      %366 = vmatprep.subr.bf16.mxu0 0
      %367 = vmatpush1.bf16.xpose.msra.mxu0 %v350
      %368 = vmatprep.subr.bf16.mxu0 0
      %369 = vmatpush2.bf16.xpose.msra.mxu0 0
      %370 = vmatprep.subr.bf16.mxu0 0
      %371 = vmatpush2.bf16.xpose.msra.mxu0 0
      %372 = vmatprep.subr.bf16.mxu0 0
      %373 = vmatpush2.bf16.xpose.msra.mxu0 0
      %374 = vmatprep.subr.bf16.mxu0 0
      %375 = vmatpush2.bf16.xpose.msra.mxu0 0
      %376 = vmatprep.subr.bf16.mxu0 0
      %377 = vmatpush2.bf16.xpose.msra.mxu0 0
      %378 = vmatprep.subr.bf16.mxu0 0
      %379 = vmatpush2.bf16.xpose.msra.mxu0 0
      %380 = vmatprep.subr.bf16.mxu0 0
      %381 = vmatpush2.bf16.xpose.msra.mxu0 0
      %382 = vmatprep.subr.bf16.mxu0 0
      %383 = vmatpush2.bf16.xpose.msra.mxu0 0
      %384 = vmatprep.mubr.bf16.mxu0 0
      %385 = vmatmul.mubr.bf16.gmra.mxu0 %v347
      %v386 = vpop.f32.mrf.mxu0
      %v387 = vadd.f32 0.0, %v386
      %v388 = vpop.f32.mrf.mxu0
      %v389 = vpop.f32.mrf.mxu0
      %v390 = vadd.f32 0.0, %v389
      %v391 = vpop.f32.mrf.mxu0
      %392 = vdwg.mxu0
      %v393 = vmul.f32 %v387, 0.35355338
      %v394 = vmul.f32 %v390, 0.35355338
      %v395 = vlaneseq
      %v396 = vshrl.u32 %v395, 7
      %s397 = smul.u32 %s22, 8
      %v398 = vstv %s397
      %v399 = vadd.s32 %v396, %v398
      %v400 = vlaneseq
      %v401 = vand.u32 %v400, 127
      %s402 = smul.u32 %s23, 8
      %v403 = vstv %s402
      %v404 = vadd.s32 %v401, %v403
      %vm405 = vcmp.gt.s32.totalorder %v404, %v399
      %v406 = vsel %vm405, -3.4028235e+38, %v393
      %v407 = vsel %vm405, -3.4028235e+38, %v394
      %v408 = vld [vmem:[#allocation2] sm:$0xff]
      %v409 = vld [vmem:[#allocation2 + $0x8] sm:$0xff]
      %v410 = vsel %vm345, %v406, -inf
      %411 = vmax.xlane.f32.xlu0 %v410
      %v412 = vpop.xlane.xlu0 %411
      %v413 = vsel %vm345, %v407, -inf
      %414 = vmax.xlane.f32.xlu0 %v413
      %v415 = vpop.xlane.xlu0 %414
      %v416 = vmax.f32 %v408, %v412
      %v417 = vmax.f32 %v409, %v415
      %v418 = vsub.f32 %v408, %v416
      %v419 = vsub.f32 %v409, %v417
      %v420 = vmul.f32 %v418, 1.442695
      %v421 = vpow.pop %v420
      %v422 = vmul.f32 %v419, 1.442695
      %v423 = vpow.pop %v422
      %425 = vset.pattern.permute.xlu0 0
      %426 = vperm.xlu0 %425, %v416
      %v427 = vpop.permute.xlu0 %426
      %430 = vset.pattern.permute.xlu0 0
      %431 = vperm.xlu0 %430, %v417
      %v432 = vpop.permute.xlu0 %431
      %v434 = vsub.f32 %v406, %v427
      %v435 = vsub.f32 %v407, %v432
      %v436 = vmul.f32 %v434, 1.442695
      %v437 = vpow.pop %v436
      %v438 = vmul.f32 %v435, 1.442695
      %v439 = vpow.pop %v438
      %v440 = vld [vmem:[#allocation3] sm:$0xff]
      %v441 = vld [vmem:[#allocation3 + $0x8] sm:$0xff]
      %v442 = vmul.f32 %v421, %v440
      %v443 = vmul.f32 %v423, %v441
      %v444 = vsel %vm345, %v437, 0.0
      %445 = vadd.xlane.f32.xlu0 %v444
      %v446 = vpop.xlane.xlu0 %445
      %v447 = vsel %vm345, %v439, 0.0
      %448 = vadd.xlane.f32.xlu0 %v447
      %v449 = vpop.xlane.xlu0 %448
      %v450 = vadd.f32 %v442, %v446
      %v451 = vadd.f32 %v443, %v449
      %vm452 = vcmask 7168
      %453 = vst.msk [vmem:[#allocation3] sm:$0xff] %vm452, %v450
      %454 = vst.msk [vmem:[#allocation3 + $0x8] sm:$0xff] %vm452, %v451
      %v455 = vld [vmem:[#allocation4] sm:$0xff]
      %v456 = vld [vmem:[#allocation4 + $0x8] sm:$0xff]
      %458 = vset.pattern.permute.xlu0 0
      %459 = vperm.xlu0 %458, %v421
      %v460 = vpop.permute.xlu0 %459
      %463 = vset.pattern.permute.xlu0 0
      %464 = vperm.xlu0 %463, %v423
      %v465 = vpop.permute.xlu0 %464
      %v467 = vmul.f32 %v460, %v455
      %v468 = vmul.f32 %v465, %v456
      %v469 = vpack.c.bf16 %v439, %v437
      %v470 = vld [vmem:[%s311] sm:$0xf]
      %v472 = vsel %vm345, %v469, 0
      %vm474 = vcmask 1043456
      %v476 = vsel %vm474, %v470, 0
      %478 = vmatprep.subr.bf16.mxu0 0
      %479 = vmatpush1.bf16.msra.mxu0 0
      %480 = vmatprep.subr.bf16.mxu0 0
      %481 = vmatpush1.bf16.msra.mxu0 0
      %482 = vmatprep.subr.bf16.mxu0 0
      %483 = vmatpush1.bf16.msra.mxu0 0
      %484 = vmatprep.subr.bf16.mxu0 0
      %485 = vmatpush1.bf16.msra.mxu0 0
      %486 = vmatprep.subr.bf16.mxu0 0
      %487 = vmatpush1.bf16.msra.mxu0 0
      %488 = vmatprep.subr.bf16.mxu0 0
      %489 = vmatpush1.bf16.msra.mxu0 0
      %490 = vmatprep.subr.bf16.mxu0 0
      %491 = vmatpush1.bf16.msra.mxu0 0
      %492 = vmatprep.subr.bf16.mxu0 0
      %493 = vmatpush1.bf16.msra.mxu0 %v476
      %494 = vmatprep.subr.bf16.mxu0 0
      %495 = vmatpush2.bf16.msra.mxu0 0
      %496 = vmatprep.subr.bf16.mxu0 0
      %497 = vmatpush2.bf16.msra.mxu0 0
      %498 = vmatprep.subr.bf16.mxu0 0
      %499 = vmatpush2.bf16.msra.mxu0 0
      %500 = vmatprep.subr.bf16.mxu0 0
      %501 = vmatpush2.bf16.msra.mxu0 0
      %502 = vmatprep.subr.bf16.mxu0 0
      %503 = vmatpush2.bf16.msra.mxu0 0
      %504 = vmatprep.subr.bf16.mxu0 0
      %505 = vmatpush2.bf16.msra.mxu0 0
      %506 = vmatprep.subr.bf16.mxu0 0
      %507 = vmatpush2.bf16.msra.mxu0 0
      %508 = vmatprep.subr.bf16.mxu0 0
      %509 = vmatpush2.bf16.msra.mxu0 0
      %510 = vmatprep.mubr.bf16.mxu0 0
      %511 = vmatmul.mubr.bf16.gmra.mxu0 %v472
      %v512 = vpop.f32.mrf.mxu0
      %v513 = vadd.f32 0.0, %v512
      %v514 = vpop.f32.mrf.mxu0
      %v515 = vpop.f32.mrf.mxu0
      %v516 = vadd.f32 0.0, %v515
      %v517 = vpop.f32.mrf.mxu0
      %518 = vdwg.mxu0
      %v519 = vadd.f32 %v467, %v513
      %v520 = vadd.f32 %v468, %v516
      %521 = vst.msk [vmem:[#allocation4] sm:$0xff] %vm345, %v519
      %522 = vst.msk [vmem:[#allocation4 + $0x8] sm:$0xff] %vm345, %v520
      %523 = vst.msk [vmem:[#allocation2] sm:$0xff] %vm452, %v416
      %524 = vst.msk [vmem:[#allocation2 + $0x8] sm:$0xff] %vm452, %v417
      // Predicated region
      $region37: #{decoder_layer_forward.13} parent=31 // pred_check
        %p525 = pneg %p325
      $region38: #{decoder_layer_forward.13} parent=31 // pred_check_branch
        %527 = sbr.rel (%p525) target = $region40
      $region39: #{decoder_layer_forward.13} parent=31 // pred_region
        %v528 = vld [vmem:[#allocation4] sm:$0xff]
        %v529 = vld [vmem:[#allocation4 + $0x8] sm:$0xff]
        %v530 = vld [vmem:[#allocation3] sm:$0xff]
        %v531 = vld [vmem:[#allocation3 + $0x8] sm:$0xff]
        %v532 = vrcp.pop %v530
        %v533 = vrcp.pop %v531
        %535 = vset.pattern.permute.xlu0 0
        %536 = vperm.xlu0 %535, %v532
        %v537 = vpop.permute.xlu0 %536
        %540 = vset.pattern.permute.xlu0 0
        %541 = vperm.xlu0 %540, %v533
        %v542 = vpop.permute.xlu0 %541
        %v544 = vmul.f32 %v528, %v537
        %v545 = vmul.f32 %v529, %v542
        %v546 = vpack.c.bf16 %v544, %v544
        %v547 = vpack.c.bf16 %v545, %v545
        %vm548 = vcmask 60416
        %549 = vst.msk [vmem:[%s323] sm:$0xf] %vm548, %v546
        %550 = vst.msk [vmem:[%s323 + $0x4] sm:$0xf] %vm548, %v547
      $region40: #{decoder_layer_forward.13} parent=31 // pred_fallthru
        _
      %p551 = scmp.lt.s32.totalorder %s20, 1
      %s552 = scalar_select %p551, %s20, 1
      %p553 = scmp.lt.s32.totalorder %s21, 1
      %s554 = scalar_select %p553, %s21, 1
      %p555 = scmp.lt.s32.totalorder %s22, 0
      %s556 = scalar_select %p555, %s22, 0
      %s557 = smul.addr %s554, 2
      %s558 = sadd.s32 %s556, %s557
      %s559 = smul.addr %s552, 4
      %s560 = sadd.s32 %s558, %s559
      %s561 = smul.addr %s560, 4
      %s562 = scalar_lea.vmem %s3, %s561
      // Predicated region
      $region41: #{decoder_layer_forward.13} parent=31 // pred_check
        %p563 = pneg %p152
      $region42: #{decoder_layer_forward.13} parent=31 // pred_check_branch
        %565 = sbr.rel (%p563) target = $region44
      $region43: #{decoder_layer_forward.13} parent=31 // pred_region
        _
      $region44: #{decoder_layer_forward.13} parent=31 // pred_fallthru
        _
    $region32: #{decoder_layer_forward.13} parent=5 // pred_fallthru
      _
    %p566 = scmp.le.s32.totalorder 2, %s9
    // Predicated region
    $region45: #{decoder_layer_forward.13} parent=5 // pred_check
      %p567 = pneg %p566
    $region46: #{decoder_layer_forward.13} parent=5 // pred_check_branch
      %569 = sbr.rel (%p567) target = $region48
    $region47: #{decoder_layer_forward.13} parent=5 // pred_region
      %s570 = ssub.s32 %s9, 2
      // Predicated region
      $region49: #{decoder_layer_forward.13} parent=47 // pred_check
        %p571 = pneg %p158
      $region50: #{decoder_layer_forward.13} parent=47 // pred_check_branch
        %573 = sbr.rel (%p571) target = $region52
      $region51: #{decoder_layer_forward.13} parent=47 // pred_region
        %p574 = scmp.lt.s32.totalorder %s24, 1
        %s575 = scalar_select %p574, %s24, 1
        %p576 = scmp.lt.s32.totalorder %s25, 1
        %s577 = scalar_select %p576, %s25, 1
        %p578 = scmp.lt.s32.totalorder %s26, 0
        %s579 = scalar_select %p578, %s26, 0
        %s580 = smul.addr %s577, 2
        %s581 = sadd.s32 %s579, %s580
        %s582 = smul.addr %s575, 4
        %s583 = sadd.s32 %s581, %s582
        %s584 = smul.addr %s583, 4
        %s585 = scalar_lea.vmem %s3, %s584
      $region52: #{decoder_layer_forward.13} parent=47 // pred_fallthru
        _
    $region48: #{decoder_layer_forward.13} parent=5 // pred_fallthru
      _
  $region6: #{decoder_layer_forward.13} parent=0 // loop_footer
    %s13 = sadd.s32 1, %s9
  $region7: #{decoder_layer_forward.13} parent=0 // loop_footer_branch
    %8 = sbr.rel target = $region3
  $region8: #{decoder_layer_forward.13} parent=0 // loop_exit
    _

// kernel: decoder_layer_forward.21
$region0: #{decoder_layer_forward.21}
  #allocation0 [shape = 'u32[]', space=smem, size = 0x4, offset = 0x4, fixed_abs, tag = 'smem constant byte address 0x4 - core index']
  #allocation1 [shape = 'u32[144,128]{1,0:T(1,128)}', space=vmem, size = 0x12000, scoped, tag = 'internal scratch']
  %s0 = inlined_call_operand.vmem [shape: bf16[16,32], index: 0, kind: input, shape index: {}]
  %s1 = inlined_call_operand.vmem [shape: bf16[32,64], index: 1, kind: input, shape index: {}]
  %s2 = inlined_call_operand.vmem [shape: bf16[32,64], index: 2, kind: input, shape index: {}]
  %s3 = inlined_call_operand.vmem [shape: bf16[64,32], index: 3, kind: input, shape index: {}]
  %s4 = inlined_call_operand.vmem [shape: f32[16,32], index: 4, kind: input, shape index: {}]
  %s5 = inlined_call_operand.hbm [shape: f32[16,32], index: 5, kind: output, shape index: {}]
  %s6 = sld [smem:[#allocation0]]
  $region34: #{decoder_layer_forward.21} parent=0
    _
  %s8 = ssub.s32 1, %s6
  %s9 = scalar_select 0, %s8, %s6
  $region1: #{decoder_layer_forward.21} parent=0
    #allocation2 [shape = 'u8[8192]{0}', space=vmem, size = 0x2000, scoped, tag = 'output window, operand 0, single buffered']
    #allocation3 [shape = 's32[1]{0}', space=sflag, size = 0x4, scoped, tag = 'scoped memory for decoder_layer_forward.21']
    %10 = vsyncpa [#allocation3], 0
    // Predicated region
    $region2: #{decoder_layer_forward.21} parent=1 // pred_check
      _
    $region3: #{decoder_layer_forward.21} parent=1 // pred_check_branch
      %12 = sbr.rel (0) target = $region5
    $region4: #{decoder_layer_forward.21} parent=1 // pred_region
      _
    $region5: #{decoder_layer_forward.21} parent=1 // pred_fallthru
      _
    // Predicated region
    $region6: #{decoder_layer_forward.21} parent=1 // pred_check
      _
    $region7: #{decoder_layer_forward.21} parent=1 // pred_check_branch
      %14 = sbr.rel (0) target = $region9
    $region8: #{decoder_layer_forward.21} parent=1 // pred_region
      _
    $region9: #{decoder_layer_forward.21} parent=1 // pred_fallthru
      _
    // Predicated region
    $region10: #{decoder_layer_forward.21} parent=1 // pred_check
      _
    $region11: #{decoder_layer_forward.21} parent=1 // pred_check_branch
      %16 = sbr.rel (0) target = $region13
    $region12: #{decoder_layer_forward.21} parent=1 // pred_region
      _
    $region13: #{decoder_layer_forward.21} parent=1 // pred_fallthru
      _
    // Predicated region
    $region14: #{decoder_layer_forward.21} parent=1 // pred_check
      _
    $region15: #{decoder_layer_forward.21} parent=1 // pred_check_branch
      %18 = sbr.rel (0) target = $region17
    $region16: #{decoder_layer_forward.21} parent=1 // pred_region
      _
    $region17: #{decoder_layer_forward.21} parent=1 // pred_fallthru
      _
    // Predicated region
    $region18: #{decoder_layer_forward.21} parent=1 // pred_check
      _
    $region19: #{decoder_layer_forward.21} parent=1 // pred_check_branch
      %20 = sbr.rel (0) target = $region21
    $region20: #{decoder_layer_forward.21} parent=1 // pred_region
      _
    $region21: #{decoder_layer_forward.21} parent=1 // pred_fallthru
      _
    %p22 = scmp.eq.s32.totalorder 0, 0
    // Predicated region
    $region22: #{decoder_layer_forward.21} parent=1 // pred_check
      %p23 = pneg %p22
    $region23: #{decoder_layer_forward.21} parent=1 // pred_check_branch
      %25 = sbr.rel (%p23) target = $region25
    $region24: #{decoder_layer_forward.21} parent=1 // pred_region
      %v26 = vld [vmem:[%s4] sm:$0xff]
      %v27 = vld [vmem:[%s4 + $0x8] sm:$0xff]
      %vm28 = vcmask 261120
      %29 = vst.msk [vmem:[#allocation2] sm:$0xff] %vm28, %v26
      %30 = vst.msk [vmem:[#allocation2 + $0x8] sm:$0xff] %vm28, %v27
    $region25: #{decoder_layer_forward.21} parent=1 // pred_fallthru
      _
    %v31 = vld [vmem:[%s0] sm:$0xf]
    %v32 = vld [vmem:[%s0 + $0x4] sm:$0xf]
    %v33 = vld [vmem:[%s1] sm:$0xf]
    %v34 = vld [vmem:[%s1 + $0x4] sm:$0xf]
    %v35 = vld [vmem:[%s1 + $0x8] sm:$0xf]
    %v36 = vld [vmem:[%s1 + $0xc] sm:$0xf]
    %v39 = vunpack.c.l.b16 %v31
    %v40 = vunpack.c.l.b16 %v32
    %v41 = vpack.c.b16 %v40, %v39
    %v46 = vunpack.c.l.b16 %v33
    %v47 = vunpack.c.l.b16 %v34
    %v48 = vunpack.c.l.b16 %v35
    %v49 = vunpack.c.l.b16 %v36
    %v50 = vpack.c.b16 %v47, %v46
    %v51 = vpack.c.b16 %v49, %v48
    %vm54 = vcmask 261120
    %v56 = vsel %vm54, %v41, 0
    %58 = vmatprep.subr.bf16.mxu0 0
    %59 = vmatpush1.bf16.msra.mxu0 0
    %60 = vmatprep.subr.bf16.mxu0 0
    %61 = vmatpush1.bf16.msra.mxu0 0
    %62 = vmatprep.subr.bf16.mxu0 0
    %63 = vmatpush1.bf16.msra.mxu0 0
    %64 = vmatprep.subr.bf16.mxu0 0
    %65 = vmatpush1.bf16.msra.mxu0 0
    %66 = vmatprep.subr.bf16.mxu0 0
    %67 = vmatpush1.bf16.msra.mxu0 0
    %68 = vmatprep.subr.bf16.mxu0 0
    %69 = vmatpush1.bf16.msra.mxu0 0
    %70 = vmatprep.subr.bf16.mxu0 0
    %71 = vmatpush1.bf16.msra.mxu0 %v51
    %72 = vmatprep.subr.bf16.mxu0 0
    %73 = vmatpush1.bf16.msra.mxu0 %v50
    %74 = vmatprep.subr.bf16.mxu0 0
    %75 = vmatpush2.bf16.msra.mxu0 0
    %76 = vmatprep.subr.bf16.mxu0 0
    %77 = vmatpush2.bf16.msra.mxu0 0
    %78 = vmatprep.subr.bf16.mxu0 0
    %79 = vmatpush2.bf16.msra.mxu0 0
    %80 = vmatprep.subr.bf16.mxu0 0
    %81 = vmatpush2.bf16.msra.mxu0 0
    %82 = vmatprep.subr.bf16.mxu0 0
    %83 = vmatpush2.bf16.msra.mxu0 0
    %84 = vmatprep.subr.bf16.mxu0 0
    %85 = vmatpush2.bf16.msra.mxu0 0
    %86 = vmatprep.subr.bf16.mxu0 0
    %87 = vmatpush2.bf16.msra.mxu0 0
    %88 = vmatprep.subr.bf16.mxu0 0
    %89 = vmatpush2.bf16.msra.mxu0 0
    %90 = vmatprep.mubr.bf16.mxu0 0
    %91 = vmatmul.mubr.bf16.gmra.mxu0 %v56
    %v92 = vpop.f32.mrf.mxu0
    %v93 = vadd.f32 0.0, %v92
    %v94 = vpop.f32.mrf.mxu0
    %v95 = vpop.f32.mrf.mxu0
    %v96 = vadd.f32 0.0, %v95
    %v97 = vpop.f32.mrf.mxu0
    %98 = vdwg.mxu0
    %v99 = vld [vmem:[%s2] sm:$0xf]
    %v100 = vld [vmem:[%s2 + $0x4] sm:$0xf]
    %v101 = vld [vmem:[%s2 + $0x8] sm:$0xf]
    %v102 = vld [vmem:[%s2 + $0xc] sm:$0xf]
    %v107 = vunpack.c.l.b16 %v99
    %v108 = vunpack.c.l.b16 %v100
    %v109 = vunpack.c.l.b16 %v101
    %v110 = vunpack.c.l.b16 %v102
    %v111 = vpack.c.b16 %v108, %v107
    %v112 = vpack.c.b16 %v110, %v109
    %115 = vmatprep.subr.bf16.mxu0 0
    %116 = vmatpush1.bf16.msra.mxu0 0
    %117 = vmatprep.subr.bf16.mxu0 0
    %118 = vmatpush1.bf16.msra.mxu0 0
    %119 = vmatprep.subr.bf16.mxu0 0
    %120 = vmatpush1.bf16.msra.mxu0 0
    %121 = vmatprep.subr.bf16.mxu0 0
    %122 = vmatpush1.bf16.msra.mxu0 0
    %123 = vmatprep.subr.bf16.mxu0 0
    %124 = vmatpush1.bf16.msra.mxu0 0
    %125 = vmatprep.subr.bf16.mxu0 0
    %126 = vmatpush1.bf16.msra.mxu0 0
    %127 = vmatprep.subr.bf16.mxu0 0
    %128 = vmatpush1.bf16.msra.mxu0 %v112
    %129 = vmatprep.subr.bf16.mxu0 0
    %130 = vmatpush1.bf16.msra.mxu0 %v111
    %131 = vmatprep.subr.bf16.mxu0 0
    %132 = vmatpush2.bf16.msra.mxu0 0
    %133 = vmatprep.subr.bf16.mxu0 0
    %134 = vmatpush2.bf16.msra.mxu0 0
    %135 = vmatprep.subr.bf16.mxu0 0
    %136 = vmatpush2.bf16.msra.mxu0 0
    %137 = vmatprep.subr.bf16.mxu0 0
    %138 = vmatpush2.bf16.msra.mxu0 0
    %139 = vmatprep.subr.bf16.mxu0 0
    %140 = vmatpush2.bf16.msra.mxu0 0
    %141 = vmatprep.subr.bf16.mxu0 0
    %142 = vmatpush2.bf16.msra.mxu0 0
    %143 = vmatprep.subr.bf16.mxu0 0
    %144 = vmatpush2.bf16.msra.mxu0 0
    %145 = vmatprep.subr.bf16.mxu0 0
    %146 = vmatpush2.bf16.msra.mxu0 0
    %147 = vmatprep.mubr.bf16.mxu0 0
    %148 = vmatmul.mubr.bf16.gmra.mxu0 %v56
    %v149 = vpop.f32.mrf.mxu0
    %v150 = vadd.f32 0.0, %v149
    %v151 = vpop.f32.mrf.mxu0
    %v152 = vpop.f32.mrf.mxu0
    %v153 = vadd.f32 0.0, %v152
    %v154 = vpop.f32.mrf.mxu0
    %155 = vdwg.mxu0
    %v156 = vxor.u32 %v93, 2147483648
    %v157 = vxor.u32 %v96, 2147483648
    %v158 = vmul.f32 %v156, 1.442695
    %v159 = vpow.pop %v158
    %v160 = vmul.f32 %v157, 1.442695
    %v161 = vpow.pop %v160
    %v162 = vadd.f32 %v159, 1.0
    %v163 = vadd.f32 %v161, 1.0
    %v164 = vrcp.pop %v162
    %v165 = vmul.f32 1.0, %v164
    %v166 = vrcp.pop %v163
    %v167 = vmul.f32 1.0, %v166
    %v168 = vmul.f32 %v93, %v165
    %v169 = vmul.f32 %v96, %v167
    %v170 = vmul.f32 %v168, %v150
    %v171 = vmul.f32 %v169, %v153
    %v172 = vpack.c.bf16 %v171, %v170
    %v173 = vld [vmem:[#allocation2] sm:$0xff]
    %v174 = vld [vmem:[#allocation2 + $0x8] sm:$0xff]
    %v175 = vld [vmem:[%s3] sm:$0xf]
    %v176 = vld [vmem:[%s3 + $0x4] sm:$0xf]
    %v177 = vld [vmem:[%s3 + $0x8] sm:$0xf]
    %v178 = vld [vmem:[%s3 + $0xc] sm:$0xf]
    %v179 = vld [vmem:[%s3 + $0x10] sm:$0xf]
    %v180 = vld [vmem:[%s3 + $0x14] sm:$0xf]
    %v181 = vld [vmem:[%s3 + $0x18] sm:$0xf]
    %v182 = vld [vmem:[%s3 + $0x1c] sm:$0xf]
    %v191 = vunpack.c.l.b16 %v175
    %v192 = vunpack.c.l.b16 %v176
    %v193 = vunpack.c.l.b16 %v177
    %v194 = vunpack.c.l.b16 %v178
    %v195 = vunpack.c.l.b16 %v179
    %v196 = vunpack.c.l.b16 %v180
    %v197 = vunpack.c.l.b16 %v181
    %v198 = vunpack.c.l.b16 %v182
    %v199 = vpack.c.b16 %v192, %v191
    %v200 = vpack.c.b16 %v194, %v193
    %v201 = vpack.c.b16 %v196, %v195
    %v202 = vpack.c.b16 %v198, %v197
    %vm207 = vcmask 523264
    %v209 = vsel %vm207, %v172, 0
    %211 = vmatprep.subr.bf16.mxu0 0
    %212 = vmatpush1.bf16.msra.mxu0 0
    %213 = vmatprep.subr.bf16.mxu0 0
    %214 = vmatpush1.bf16.msra.mxu0 0
    %215 = vmatprep.subr.bf16.mxu0 0
    %216 = vmatpush1.bf16.msra.mxu0 0
    %217 = vmatprep.subr.bf16.mxu0 0
    %218 = vmatpush1.bf16.msra.mxu0 0
    %219 = vmatprep.subr.bf16.mxu0 0
    %220 = vmatpush1.bf16.msra.mxu0 %v202
    %221 = vmatprep.subr.bf16.mxu0 0
    %222 = vmatpush1.bf16.msra.mxu0 %v201
    %223 = vmatprep.subr.bf16.mxu0 0
    %224 = vmatpush1.bf16.msra.mxu0 %v200
    %225 = vmatprep.subr.bf16.mxu0 0
    %226 = vmatpush1.bf16.msra.mxu0 %v199
    %227 = vmatprep.subr.bf16.mxu0 0
    %228 = vmatpush2.bf16.msra.mxu0 0
    %229 = vmatprep.subr.bf16.mxu0 0
    %230 = vmatpush2.bf16.msra.mxu0 0
    %231 = vmatprep.subr.bf16.mxu0 0
    %232 = vmatpush2.bf16.msra.mxu0 0
    %233 = vmatprep.subr.bf16.mxu0 0
    %234 = vmatpush2.bf16.msra.mxu0 0
    %235 = vmatprep.subr.bf16.mxu0 0
    %236 = vmatpush2.bf16.msra.mxu0 0
    %237 = vmatprep.subr.bf16.mxu0 0
    %238 = vmatpush2.bf16.msra.mxu0 0
    %239 = vmatprep.subr.bf16.mxu0 0
    %240 = vmatpush2.bf16.msra.mxu0 0
    %241 = vmatprep.subr.bf16.mxu0 0
    %242 = vmatpush2.bf16.msra.mxu0 0
    %243 = vmatprep.mubr.bf16.mxu0 0
    %244 = vmatmul.mubr.bf16.gmra.mxu0 %v209
    %v245 = vpop.f32.mrf.mxu0
    %v246 = vadd.f32 0.0, %v245
    %v247 = vpop.f32.mrf.mxu0
    %v248 = vpop.f32.mrf.mxu0
    %v249 = vadd.f32 0.0, %v248
    %v250 = vpop.f32.mrf.mxu0
    %251 = vdwg.mxu0
    %v252 = vadd.f32 %v173, %v246
    %v253 = vadd.f32 %v174, %v249
    %254 = vst.msk [vmem:[#allocation2] sm:$0xff] %vm54, %v252
    %255 = vst.msk [vmem:[#allocation2 + $0x8] sm:$0xff] %vm54, %v253
    // Predicated region
    $region26: #{decoder_layer_forward.21} parent=1 // pred_check
      _
    $region27: #{decoder_layer_forward.21} parent=1 // pred_check_branch
      %257 = sbr.rel (0) target = $region29
    $region28: #{decoder_layer_forward.21} parent=1 // pred_region
      %s259 = ssub.s32 256, 256
      %260 = vsyncadd [#allocation3], %s259
      %s261 = sshll.u32 [#allocation2], 4
      %s262 = int_to_ptr.vmem [resolvable:$true] %s261
      %267 = dma.vmem_to_hbm [thread:$0]  %s262, 256, %s5, [#allocation3], 128, 128, 8
    $region29: #{decoder_layer_forward.21} parent=1 // pred_fallthru
      _
    // Predicated region
    $region30: #{decoder_layer_forward.21} parent=1 // pred_check
      _
    $region31: #{decoder_layer_forward.21} parent=1 // pred_check_branch
      %269 = sbr.rel (0) target = $region33
    $region32: #{decoder_layer_forward.21} parent=1 // pred_region
      %270 = dma.done [#allocation3], 256
    $region33: #{decoder_layer_forward.21} parent=1 // pred_fallthru
      _
    %271 = vsyncpa [#allocation3], 1

// kernel: decoder_layer_forward.18
$region0: #{decoder_layer_forward.18}
  #allocation0 [shape = 'u32[]', space=smem, size = 0x4, offset = 0x4, fixed_abs, tag = 'smem constant byte address 0x4 - core index']
  #allocation1 [shape = 'u32[144,128]{1,0:T(1,128)}', space=vmem, size = 0x12000, scoped, tag = 'internal scratch']
  %s0 = inlined_call_operand.vmem [shape: bf16[2,2,2,8,8], index: 0, kind: input, shape index: {}]
  %s1 = inlined_call_operand.vmem [shape: bf16[2,2,8,8], index: 1, kind: input, shape index: {}]
  %s2 = inlined_call_operand.vmem [shape: bf16[2,2,8,8], index: 2, kind: input, shape index: {}]
  %s3 = inlined_call_operand.vmem [shape: bf16[2,2,2,8,8], index: 3, kind: output, shape index: {0}]
  %s4 = inlined_call_operand.hbm [shape: f32[2,2,2,8,8], index: 4, kind: output, shape index: {1}]
  %5 = xla_tuple %s3, %s4
  %s6 = sld [smem:[#allocation0]]
  $region53: #{decoder_layer_forward.18} parent=0
    _
  %s8 = ssub.s32 1, %s6
  %s9 = scalar_select 0, %s8, %s6
  $region1: #{decoder_layer_forward.18} parent=0
    #allocation2 [shape = 'u8[16384]{0}', space=vmem, size = 0x4000, scoped, tag = 'output window, operand 1']
    #allocation3 [shape = 's32[2]{0}', space=sflag, size = 0x8, scoped, tag = 'scoped memory for decoder_layer_forward.18']
    %10 = vsyncpa [#allocation3], 0
    %s11 = scalar_lea.sflag [#allocation3], 1
    %12 = vsyncpa %s11, 0
    loop: start=0, step=1, limit=6
    $region2: #{decoder_layer_forward.18} parent=1 // loop_pre_header
      _
    $region3: #{decoder_layer_forward.18} parent=1 // loop_header
      %s14 = sphi 0, %s18
      %p15 = scmp.ge.s32.totalorder %s14, 6
      %s21 = sphi 0, %s40
      %s22 = sphi 0, %s36
      %s23 = sphi 0, %s32
      %s24 = sphi 0, %s21
      %s25 = sphi 0, %s22
      %s26 = sphi 0, %s23
      %s27 = sphi 0, %s24
      %s28 = sphi 0, %s25
      %s29 = sphi 0, %s26
      %s47 = sphi 0, %s49
      %s50 = sphi 0, %s47
      %s51 = sphi 0, %s50
      %s67 = sphi 0, %s51
      %s75 = sphi 0, %s77
      %s78 = sphi 0, %s75
      %s79 = sphi 0, %s78
      %s95 = sphi 0, %s79
      %s103 = sphi 0, %s105
      %s106 = sphi 0, %s103
      %s107 = sphi 0, %s106
      %s123 = sphi 0, %s107
      %s133 = sphi 0, %s135
      %s136 = sphi 0, %s133
      %s137 = sphi 0, %s136
      %s153 = sphi 0, %s137
      %s163 = sphi 0, %s165
      %s166 = sphi 0, %s163
      %s167 = sphi 0, %s166
      %s183 = sphi 0, %s167
    $region4: #{decoder_layer_forward.18} parent=1 // loop_header_branch
      %17 = sbr.rel (%p15) target = $region8
    $region5: #{decoder_layer_forward.18} parent=1 // loop_body
      %s19 = ssub.s32 %s14, 1
      %s20 = ssub.s32 %s14, 2
      %s30 = sadd.s32 1, %s23
      %p31 = scmp.ge.s32.totalorder %s30, 1
      %s32 = scalar_select %p31, 0, %s30
      %s33 = sadd.s32 1, %s22
      %s34 = scalar_select %p31, %s33, %s22
      %p35 = scmp.ge.s32.totalorder %s34, 2
      %s36 = scalar_select %p35, 0, %s34
      %s37 = sadd.s32 1, %s21
      %s38 = scalar_select %p35, %s37, %s21
      %p39 = scmp.ge.s32.totalorder %s38, 2
      %s40 = scalar_select %p39, 0, %s38
      %s41 = ssub.s32 %s21, %s40
      %s42 = ssub.s32 %s22, %s36
      %s43 = sor.u32 %s41, %s42
      %s44 = ssub.s32 %s23, %s32
      %s45 = sor.u32 %s43, %s44
      %p46 = scmp.eq.s32.totalorder %s45, 0
      %s48 = sadd.s32 %s47, 1
      %s49 = scalar_select %p46, %s47, %s48
      %p52 = pneg %p46
      %p53 = scmp.eq.s32.totalorder %s14, 3
      %p54 = por %p52, %p53
      %p55 = scmp.ne.s32.totalorder %s47, %s50
      %p56 = scmp.eq.s32.totalorder %s14, 0
      %p57 = por %p55, %p56
      %p58 = scmp.ne.s32.totalorder %s47, %s50
      %p59 = scmp.eq.s32.totalorder %s19, 3
      %p60 = por %p58, %p59
      %p61 = scmp.ne.s32.totalorder %s50, %s51
      %p62 = scmp.eq.s32.totalorder %s19, 0
      %p63 = por %p61, %p62
      %p64 = scmp.ne.s32.totalorder %s50, %s51
      %p65 = scmp.eq.s32.totalorder %s20, 3
      %p66 = por %p64, %p65
      %p68 = scmp.ne.s32.totalorder %s51, %s67
      %p69 = scmp.eq.s32.totalorder %s20, 0
      %p70 = por %p68, %p69
      %s71 = ssub.s32 %s21, %s40
      %s72 = ssub.s32 %s22, %s36
      %s73 = sor.u32 %s71, %s72
      %p74 = scmp.eq.s32.totalorder %s73, 0
      %s76 = sadd.s32 %s75, 1
      %s77 = scalar_select %p74, %s75, %s76
      %p80 = pneg %p74
      %p81 = scmp.eq.s32.totalorder %s14, 3
      %p82 = por %p80, %p81
      %p83 = scmp.ne.s32.totalorder %s75, %s78
      %p84 = scmp.eq.s32.totalorder %s14, 0
      %p85 = por %p83, %p84
      %p86 = scmp.ne.s32.totalorder %s75, %s78
      %p87 = scmp.eq.s32.totalorder %s19, 3
      %p88 = por %p86, %p87
      %p89 = scmp.ne.s32.totalorder %s78, %s79
      %p90 = scmp.eq.s32.totalorder %s19, 0
      %p91 = por %p89, %p90
      %p92 = scmp.ne.s32.totalorder %s78, %s79
      %p93 = scmp.eq.s32.totalorder %s20, 3
      %p94 = por %p92, %p93
      %p96 = scmp.ne.s32.totalorder %s79, %s95
      %p97 = scmp.eq.s32.totalorder %s20, 0
      %p98 = por %p96, %p97
      %s99 = ssub.s32 %s21, %s40
      %s100 = ssub.s32 %s22, %s36
      %s101 = sor.u32 %s99, %s100
      %p102 = scmp.eq.s32.totalorder %s101, 0
      %s104 = sadd.s32 %s103, 1
      %s105 = scalar_select %p102, %s103, %s104
      %p108 = pneg %p102
      %p109 = scmp.eq.s32.totalorder %s14, 3
      %p110 = por %p108, %p109
      %p111 = scmp.ne.s32.totalorder %s103, %s106
      %p112 = scmp.eq.s32.totalorder %s14, 0
      %p113 = por %p111, %p112
      %p114 = scmp.ne.s32.totalorder %s103, %s106
      %p115 = scmp.eq.s32.totalorder %s19, 3
      %p116 = por %p114, %p115
      %p117 = scmp.ne.s32.totalorder %s106, %s107
      %p118 = scmp.eq.s32.totalorder %s19, 0
      %p119 = por %p117, %p118
      %p120 = scmp.ne.s32.totalorder %s106, %s107
      %p121 = scmp.eq.s32.totalorder %s20, 3
      %p122 = por %p120, %p121
      %p124 = scmp.ne.s32.totalorder %s107, %s123
      %p125 = scmp.eq.s32.totalorder %s20, 0
      %p126 = por %p124, %p125
      %s127 = ssub.s32 %s21, %s40
      %s128 = ssub.s32 %s22, %s36
      %s129 = sor.u32 %s127, %s128
      %s130 = ssub.s32 %s23, %s32
      %s131 = sor.u32 %s129, %s130
      %p132 = scmp.eq.s32.totalorder %s131, 0
      %s134 = sadd.s32 %s133, 1
      %s135 = scalar_select %p132, %s133, %s134
      %p138 = pneg %p132
      %p139 = scmp.eq.s32.totalorder %s14, 3
      %p140 = por %p138, %p139
      %p141 = scmp.ne.s32.totalorder %s133, %s136
      %p142 = scmp.eq.s32.totalorder %s14, 0
      %p143 = por %p141, %p142
      %p144 = scmp.ne.s32.totalorder %s133, %s136
      %p145 = scmp.eq.s32.totalorder %s19, 3
      %p146 = por %p144, %p145
      %p147 = scmp.ne.s32.totalorder %s136, %s137
      %p148 = scmp.eq.s32.totalorder %s19, 0
      %p149 = por %p147, %p148
      %p150 = scmp.ne.s32.totalorder %s136, %s137
      %p151 = scmp.eq.s32.totalorder %s20, 3
      %p152 = por %p150, %p151
      %p154 = scmp.ne.s32.totalorder %s137, %s153
      %p155 = scmp.eq.s32.totalorder %s20, 0
      %p156 = por %p154, %p155
      %s157 = ssub.s32 %s21, %s40
      %s158 = ssub.s32 %s22, %s36
      %s159 = sor.u32 %s157, %s158
      %s160 = ssub.s32 %s23, %s32
      %s161 = sor.u32 %s159, %s160
      %p162 = scmp.eq.s32.totalorder %s161, 0
      %s164 = sadd.s32 %s163, 1
      %s165 = scalar_select %p162, %s163, %s164
      %p168 = pneg %p162
      %p169 = scmp.eq.s32.totalorder %s14, 3
      %p170 = por %p168, %p169
      %p171 = scmp.ne.s32.totalorder %s163, %s166
      %p172 = scmp.eq.s32.totalorder %s14, 0
      %p173 = por %p171, %p172
      %p174 = scmp.ne.s32.totalorder %s163, %s166
      %p175 = scmp.eq.s32.totalorder %s19, 3
      %p176 = por %p174, %p175
      %p177 = scmp.ne.s32.totalorder %s166, %s167
      %p178 = scmp.eq.s32.totalorder %s19, 0
      %p179 = por %p177, %p178
      %p180 = scmp.ne.s32.totalorder %s166, %s167
      %p181 = scmp.eq.s32.totalorder %s20, 3
      %p182 = por %p180, %p181
      %p184 = scmp.ne.s32.totalorder %s167, %s183
      %p185 = scmp.eq.s32.totalorder %s20, 0
      %p186 = por %p184, %p185
      %p187 = scmp.le.s32.totalorder 1, %s14
      %p188 = scmp.lt.s32.totalorder %s14, 5
      %p189 = pnand %p187, %p188
      %p190 = pneg %p189
      // Predicated region
      $region9: #{decoder_layer_forward.18} parent=5 // pred_check
        _
      $region10: #{decoder_layer_forward.18} parent=5 // pred_check_branch
        %192 = sbr.rel (%p189) target = $region12
      $region11: #{decoder_layer_forward.18} parent=5 // pred_region
        %s193 = ssub.s32 %s14, 1
      $region12: #{decoder_layer_forward.18} parent=5 // pred_fallthru
        _
      %p194 = scmp.lt.s32.totalorder %s14, 4
      // Predicated region
      $region13: #{decoder_layer_forward.18} parent=5 // pred_check
        %p195 = pneg %p194
      $region14: #{decoder_layer_forward.18} parent=5 // pred_check_branch
        %197 = sbr.rel (%p195) target = $region16
      $region15: #{decoder_layer_forward.18} parent=5 // pred_region
        // Predicated region
        $region17: #{decoder_layer_forward.18} parent=15 // pred_check
          %p198 = pneg %p57
        $region18: #{decoder_layer_forward.18} parent=15 // pred_check_branch
          %200 = sbr.rel (%p198) target = $region20
        $region19: #{decoder_layer_forward.18} parent=15 // pred_region
          %p201 = scmp.lt.s32.totalorder %s21, 1
          %s202 = scalar_select %p201, %s21, 1
          %p203 = scmp.lt.s32.totalorder %s22, 1
          %s204 = scalar_select %p203, %s22, 1
          %p205 = scmp.lt.s32.totalorder %s23, 0
          %s206 = scalar_select %p205, %s23, 0
          %s207 = smul.addr %s204, 2
          %s208 = sadd.s32 %s206, %s207
          %s209 = smul.addr %s202, 4
          %s210 = sadd.s32 %s208, %s209
          %s211 = smul.addr %s210, 4
          %s212 = scalar_lea.vmem %s0, %s211
        $region20: #{decoder_layer_forward.18} parent=15 // pred_fallthru
          _
        // Predicated region
        $region21: #{decoder_layer_forward.18} parent=15 // pred_check
          %p213 = pneg %p85
        $region22: #{decoder_layer_forward.18} parent=15 // pred_check_branch
          %215 = sbr.rel (%p213) target = $region24
        $region23: #{decoder_layer_forward.18} parent=15 // pred_region
          %p216 = scmp.lt.s32.totalorder %s21, 1
          %s217 = scalar_select %p216, %s21, 1
          %p218 = scmp.lt.s32.totalorder %s22, 1
          %s219 = scalar_select %p218, %s22, 1
          %s220 = smul.addr %s217, 2
          %s221 = sadd.s32 %s219, %s220
          %s222 = smul.addr %s221, 4
          %s223 = scalar_lea.vmem %s1, %s222
        $region24: #{decoder_layer_forward.18} parent=15 // pred_fallthru
          _
        // Predicated region
        $region25: #{decoder_layer_forward.18} parent=15 // pred_check
          %p224 = pneg %p113
        $region26: #{decoder_layer_forward.18} parent=15 // pred_check_branch
          %226 = sbr.rel (%p224) target = $region28
        $region27: #{decoder_layer_forward.18} parent=15 // pred_region
          %p227 = scmp.lt.s32.totalorder %s21, 1
          %s228 = scalar_select %p227, %s21, 1
          %p229 = scmp.lt.s32.totalorder %s22, 1
          %s230 = scalar_select %p229, %s22, 1
          %s231 = smul.addr %s228, 2
          %s232 = sadd.s32 %s230, %s231
          %s233 = smul.addr %s232, 4
          %s234 = scalar_lea.vmem %s2, %s233
        $region28: #{decoder_layer_forward.18} parent=15 // pred_fallthru
          _
      $region16: #{decoder_layer_forward.18} parent=5 // pred_fallthru
        _
      %p235 = scmp.le.s32.totalorder 1, %s14
      %p236 = scmp.lt.s32.totalorder %s14, 5
      %p237 = pnand %p235, %p236
      %p238 = pneg %p237
      // Predicated region
      $region29: #{decoder_layer_forward.18} parent=5 // pred_check
        _
      $region30: #{decoder_layer_forward.18} parent=5 // pred_check_branch
        %240 = sbr.rel (%p237) target = $region32
      $region31: #{decoder_layer_forward.18} parent=5 // pred_region
        %s241 = ssub.s32 %s14, 1
        %p242 = scmp.lt.s32.totalorder %s24, 1
        %s243 = scalar_select %p242, %s24, 1
        %p244 = scmp.lt.s32.totalorder %s25, 1
        %s245 = scalar_select %p244, %s25, 1
        %p246 = scmp.lt.s32.totalorder %s26, 0
        %s247 = scalar_select %p246, %s26, 0
        %s248 = smul.addr %s245, 2
        %s249 = sadd.s32 %s247, %s248
        %s250 = smul.addr %s243, 4
        %s251 = sadd.s32 %s249, %s250
        %s252 = smul.addr %s251, 4
        %s253 = scalar_lea.vmem %s0, %s252
        %p254 = pneg %p63
        %p255 = pneg %p60
        %p256 = scmp.lt.s32.totalorder %s24, 1
        %s257 = scalar_select %p256, %s24, 1
        %p258 = scmp.lt.s32.totalorder %s25, 1
        %s259 = scalar_select %p258, %s25, 1
        %s260 = smul.addr %s257, 2
        %s261 = sadd.s32 %s259, %s260
        %s262 = smul.addr %s261, 4
        %s263 = scalar_lea.vmem %s1, %s262
        %p264 = pneg %p91
        %p265 = pneg %p88
        %p266 = scmp.lt.s32.totalorder %s24, 1
        %s267 = scalar_select %p266, %s24, 1
        %p268 = scmp.lt.s32.totalorder %s25, 1
        %s269 = scalar_select %p268, %s25, 1
        %s270 = smul.addr %s267, 2
        %s271 = sadd.s32 %s269, %s270
        %s272 = smul.addr %s271, 4
        %s273 = scalar_lea.vmem %s2, %s272
        %p274 = pneg %p119
        %p275 = pneg %p116
        %p276 = pneg %p149
        %p277 = pneg %p146
        %p278 = scmp.lt.s32.totalorder %s24, 1
        %s279 = scalar_select %p278, %s24, 1
        %p280 = scmp.lt.s32.totalorder %s25, 1
        %s281 = scalar_select %p280, %s25, 1
        %p282 = scmp.lt.s32.totalorder %s26, 0
        %s283 = scalar_select %p282, %s26, 0
        %s284 = smul.addr %s281, 2
        %s285 = sadd.s32 %s283, %s284
        %s286 = smul.addr %s279, 4
        %s287 = sadd.s32 %s285, %s286
        %s288 = smul.addr %s287, 4
        %s289 = scalar_lea.vmem %s3, %s288
        %p290 = pneg %p179
        %p291 = pneg %p176
        %s292 = sand.u32 %s166, 1
        %s293 = scalar_lea.sflag [#allocation3], %s292
        %s294 = sand.u32 %s166, 1
        %s295 = smul.addr %s294, 16
        %s296 = scalar_lea.vmem [#allocation2], %s295
        %p297 = scmp.lt.s32.totalorder %s24, 1
        %s298 = scalar_select %p297, %s24, 1
        %p299 = scmp.lt.s32.totalorder %s25, 1
        %s300 = scalar_select %p299, %s25, 1
        %p301 = scmp.lt.s32.totalorder %s26, 0
        %s302 = scalar_select %p301, %s26, 0
        %s303 = smul.addr %s300, 2
        %s304 = sadd.s32 %s302, %s303
        %s305 = smul.addr %s298, 4
        %s306 = sadd.s32 %s304, %s305
        %s307 = smul.addr %s306, 4
        %s308 = scalar_lea.vmem %s0, %s307
        %p309 = scmp.lt.s32.totalorder %s24, 1
        %s310 = scalar_select %p309, %s24, 1
        %p311 = scmp.lt.s32.totalorder %s25, 1
        %s312 = scalar_select %p311, %s25, 1
        %s313 = smul.addr %s310, 2
        %s314 = sadd.s32 %s312, %s313
        %s315 = smul.addr %s314, 4
        %s316 = scalar_lea.vmem %s1, %s315
        %p317 = scmp.lt.s32.totalorder %s24, 1
        %s318 = scalar_select %p317, %s24, 1
        %p319 = scmp.lt.s32.totalorder %s25, 1
        %s320 = scalar_select %p319, %s25, 1
        %s321 = smul.addr %s318, 2
        %s322 = sadd.s32 %s320, %s321
        %s323 = smul.addr %s322, 4
        %s324 = scalar_lea.vmem %s2, %s323
        %p325 = scmp.lt.s32.totalorder %s24, 1
        %s326 = scalar_select %p325, %s24, 1
        %p327 = scmp.lt.s32.totalorder %s25, 1
        %s328 = scalar_select %p327, %s25, 1
        %p329 = scmp.lt.s32.totalorder %s26, 0
        %s330 = scalar_select %p329, %s26, 0
        %s331 = smul.addr %s328, 2
        %s332 = sadd.s32 %s330, %s331
        %s333 = smul.addr %s326, 4
        %s334 = sadd.s32 %s332, %s333
        %s335 = smul.addr %s334, 4
        %s336 = scalar_lea.vmem %s3, %s335
        %v338 = vld [vmem:[%s308] sm:$0xf]
        %v339 = vld [vmem:[%s308 + $0x4] sm:$0xf]
        %v340 = vld [vmem:[%s316] sm:$0xf]
        %v343 = vunpack.c.l.b16 %v338
        %v344 = vunpack.c.l.b16 %v339
        %v345 = vpack.c.b16 %v344, %v343
        %vm346 = vcmask 64512
        %v348 = vsel %vm346, %v345, 0
        %v351 = vsel %vm346, %v340, 0
        %353 = vmatprep.subr.bf16.mxu0 0
        %354 = vmatpush1.bf16.xpose.msra.mxu0 0
        %355 = vmatprep.subr.bf16.mxu0 0
        %356 = vmatpush1.bf16.xpose.msra.mxu0 0
        %357 = vmatprep.subr.bf16.mxu0 0
        %358 = vmatpush1.bf16.xpose.msra.mxu0 0
        %359 = vmatprep.subr.bf16.mxu0 0
        %360 = vmatpush1.bf16.xpose.msra.mxu0 0
        %361 = vmatprep.subr.bf16.mxu0 0
        %362 = vmatpush1.bf16.xpose.msra.mxu0 0
        %363 = vmatprep.subr.bf16.mxu0 0
        %364 = vmatpush1.bf16.xpose.msra.mxu0 0
        %365 = vmatprep.subr.bf16.mxu0 0
        %366 = vmatpush1.bf16.xpose.msra.mxu0 0
        %367 = vmatprep.subr.bf16.mxu0 0
        %368 = vmatpush1.bf16.xpose.msra.mxu0 %v351
        %369 = vmatprep.subr.bf16.mxu0 0
        %370 = vmatpush2.bf16.xpose.msra.mxu0 0
        %371 = vmatprep.subr.bf16.mxu0 0
        %372 = vmatpush2.bf16.xpose.msra.mxu0 0
        %373 = vmatprep.subr.bf16.mxu0 0
        %374 = vmatpush2.bf16.xpose.msra.mxu0 0
        %375 = vmatprep.subr.bf16.mxu0 0
        %376 = vmatpush2.bf16.xpose.msra.mxu0 0
        %377 = vmatprep.subr.bf16.mxu0 0
        %378 = vmatpush2.bf16.xpose.msra.mxu0 0
        %379 = vmatprep.subr.bf16.mxu0 0
        %380 = vmatpush2.bf16.xpose.msra.mxu0 0
        %381 = vmatprep.subr.bf16.mxu0 0
        %382 = vmatpush2.bf16.xpose.msra.mxu0 0
        %383 = vmatprep.subr.bf16.mxu0 0
        %384 = vmatpush2.bf16.xpose.msra.mxu0 0
        %385 = vmatprep.mubr.bf16.mxu0 0
        %386 = vmatmul.mubr.bf16.gmra.mxu0 %v348
        %v387 = vpop.f32.mrf.mxu0
        %v388 = vadd.f32 0.0, %v387
        %v389 = vpop.f32.mrf.mxu0
        %v390 = vpop.f32.mrf.mxu0
        %v391 = vadd.f32 0.0, %v390
        %v392 = vpop.f32.mrf.mxu0
        %393 = vdwg.mxu0
        %v394 = vmul.f32 %v388, 0.35355338
        %v395 = vmul.f32 %v391, 0.35355338
        %v396 = vsel %vm346, %v394, -inf
        %397 = vmax.xlane.f32.xlu0 %v396
        %v398 = vpop.xlane.xlu0 %397
        %v399 = vsel %vm346, %v395, -inf
        %400 = vmax.xlane.f32.xlu0 %v399
        %v401 = vpop.xlane.xlu0 %400
        %v402 = vsub.f32 %v394, %v398
        %v403 = vsub.f32 %v395, %v401
        %v404 = vmul.f32 %v402, 1.442695
        %v405 = vpow.pop %v404
        %v406 = vmul.f32 %v403, 1.442695
        %v407 = vpow.pop %v406
        %v408 = vsel %vm346, %v405, 0.0
        %409 = vadd.xlane.f32.xlu0 %v408
        %v410 = vpop.xlane.xlu0 %409
        %v411 = vsel %vm346, %v407, 0.0
        %412 = vadd.xlane.f32.xlu0 %v411
        %v413 = vpop.xlane.xlu0 %412
        %v414 = vrcp.pop %v410
        %v415 = vmul.f32 %v405, %v414
        %v416 = vrcp.pop %v413
        %v417 = vmul.f32 %v407, %v416
        %418 = vst.msk [vmem:[%s296] sm:$0xff] %vm346, %v415
        %419 = vst.msk [vmem:[%s296 + $0x8] sm:$0xff] %vm346, %v417
        %v420 = vpack.c.bf16 %v417, %v415
        %v421 = vld [vmem:[%s324] sm:$0xf]
        %v423 = vsel %vm346, %v420, 0
        %vm425 = vcmask 1043456
        %v427 = vsel %vm425, %v421, 0
        %429 = vmatprep.subr.bf16.mxu0 0
        %430 = vmatpush1.bf16.msra.mxu0 0
        %431 = vmatprep.subr.bf16.mxu0 0
        %432 = vmatpush1.bf16.msra.mxu0 0
        %433 = vmatprep.subr.bf16.mxu0 0
        %434 = vmatpush1.bf16.msra.mxu0 0
        %435 = vmatprep.subr.bf16.mxu0 0
        %436 = vmatpush1.bf16.msra.mxu0 0
        %437 = vmatprep.subr.bf16.mxu0 0
        %438 = vmatpush1.bf16.msra.mxu0 0
        %439 = vmatprep.subr.bf16.mxu0 0
        %440 = vmatpush1.bf16.msra.mxu0 0
        %441 = vmatprep.subr.bf16.mxu0 0
        %442 = vmatpush1.bf16.msra.mxu0 0
        %443 = vmatprep.subr.bf16.mxu0 0
        %444 = vmatpush1.bf16.msra.mxu0 %v427
        %445 = vmatprep.subr.bf16.mxu0 0
        %446 = vmatpush2.bf16.msra.mxu0 0
        %447 = vmatprep.subr.bf16.mxu0 0
        %448 = vmatpush2.bf16.msra.mxu0 0
        %449 = vmatprep.subr.bf16.mxu0 0
        %450 = vmatpush2.bf16.msra.mxu0 0
        %451 = vmatprep.subr.bf16.mxu0 0
        %452 = vmatpush2.bf16.msra.mxu0 0
        %453 = vmatprep.subr.bf16.mxu0 0
        %454 = vmatpush2.bf16.msra.mxu0 0
        %455 = vmatprep.subr.bf16.mxu0 0
        %456 = vmatpush2.bf16.msra.mxu0 0
        %457 = vmatprep.subr.bf16.mxu0 0
        %458 = vmatpush2.bf16.msra.mxu0 0
        %459 = vmatprep.subr.bf16.mxu0 0
        %460 = vmatpush2.bf16.msra.mxu0 0
        %461 = vmatprep.mubr.bf16.mxu0 0
        %462 = vmatmul.mubr.bf16.gmra.mxu0 %v423
        %v463 = vpop.f32.mrf.mxu0
        %v464 = vadd.f32 0.0, %v463
        %v465 = vpop.f32.mrf.mxu0
        %v466 = vpop.f32.mrf.mxu0
        %v467 = vadd.f32 0.0, %v466
        %v468 = vpop.f32.mrf.mxu0
        %469 = vdwg.mxu0
        %v470 = vpack.c.bf16 %v464, %v464
        %v471 = vpack.c.bf16 %v467, %v467
        %vm472 = vcmask 60416
        %473 = vst.msk [vmem:[%s336] sm:$0xf] %vm472, %v470
        %474 = vst.msk [vmem:[%s336 + $0x4] sm:$0xf] %vm472, %v471
        %p475 = scmp.lt.s32.totalorder %s24, 1
        %s476 = scalar_select %p475, %s24, 1
        %p477 = scmp.lt.s32.totalorder %s25, 1
        %s478 = scalar_select %p477, %s25, 1
        %p479 = scmp.lt.s32.totalorder %s26, 0
        %s480 = scalar_select %p479, %s26, 0
        %s481 = smul.addr %s478, 2
        %s482 = sadd.s32 %s480, %s481
        %s483 = smul.addr %s476, 4
        %s484 = sadd.s32 %s482, %s483
        %s485 = smul.addr %s484, 4
        %s486 = scalar_lea.vmem %s3, %s485
        %s487 = sand.u32 %s166, 1
        %s488 = scalar_lea.sflag [#allocation3], %s487
        %s489 = sand.u32 %s166, 1
        %s490 = smul.addr %s489, 16
        %s491 = scalar_lea.vmem [#allocation2], %s490
        // Predicated region
        $region33: #{decoder_layer_forward.18} parent=31 // pred_check
          %p492 = pneg %p146
        $region34: #{decoder_layer_forward.18} parent=31 // pred_check_branch
          %494 = sbr.rel (%p492) target = $region36
        $region35: #{decoder_layer_forward.18} parent=31 // pred_region
          _
        $region36: #{decoder_layer_forward.18} parent=31 // pred_fallthru
          _
        // Predicated region
        $region37: #{decoder_layer_forward.18} parent=31 // pred_check
          %p495 = pneg %p176
        $region38: #{decoder_layer_forward.18} parent=31 // pred_check_branch
          %497 = sbr.rel (%p495) target = $region40
        $region39: #{decoder_layer_forward.18} parent=31 // pred_region
          %s499 = ssub.s32 256, 256
          %500 = vsyncadd %s488, %s499
          %s501 = smul.addr %s25, 2
          %s502 = sadd.s32 %s26, %s501
          %s503 = smul.addr %s24, 4
          %s504 = sadd.s32 %s502, %s503
          %s505 = smul.addr %s504, 128
          %s506 = scalar_lea.hbm %s4, %s505
          %s507 = sshll.u32 %s491, 4
          %s508 = int_to_ptr.vmem [resolvable:$true] %s507
          %513 = dma.vmem_to_hbm [thread:$0]  %s508, 256, %s506, %s488, 128, 128, 8
        $region40: #{decoder_layer_forward.18} parent=31 // pred_fallthru
          _
      $region32: #{decoder_layer_forward.18} parent=5 // pred_fallthru
        _
      %p514 = scmp.le.s32.totalorder 2, %s14
      // Predicated region
      $region41: #{decoder_layer_forward.18} parent=5 // pred_check
        %p515 = pneg %p514
      $region42: #{decoder_layer_forward.18} parent=5 // pred_check_branch
        %517 = sbr.rel (%p515) target = $region44
      $region43: #{decoder_layer_forward.18} parent=5 // pred_region
        %s518 = ssub.s32 %s14, 2
        // Predicated region
        $region45: #{decoder_layer_forward.18} parent=43 // pred_check
          %p519 = pneg %p152
        $region46: #{decoder_layer_forward.18} parent=43 // pred_check_branch
          %521 = sbr.rel (%p519) target = $region48
        $region47: #{decoder_layer_forward.18} parent=43 // pred_region
          %p522 = scmp.lt.s32.totalorder %s27, 1
          %s523 = scalar_select %p522, %s27, 1
          %p524 = scmp.lt.s32.totalorder %s28, 1
          %s525 = scalar_select %p524, %s28, 1
          %p526 = scmp.lt.s32.totalorder %s29, 0
          %s527 = scalar_select %p526, %s29, 0
          %s528 = smul.addr %s525, 2
          %s529 = sadd.s32 %s527, %s528
          %s530 = smul.addr %s523, 4
          %s531 = sadd.s32 %s529, %s530
          %s532 = smul.addr %s531, 4
          %s533 = scalar_lea.vmem %s3, %s532
        $region48: #{decoder_layer_forward.18} parent=43 // pred_fallthru
          _
        // Predicated region
        $region49: #{decoder_layer_forward.18} parent=43 // pred_check
          %p534 = pneg %p182
        $region50: #{decoder_layer_forward.18} parent=43 // pred_check_branch
          %536 = sbr.rel (%p534) target = $region52
        $region51: #{decoder_layer_forward.18} parent=43 // pred_region
          %s537 = sand.u32 %s167, 1
          %s538 = scalar_lea.sflag [#allocation3], %s537
          %s539 = sand.u32 %s167, 1
          %s540 = smul.addr %s539, 16
          %s541 = scalar_lea.vmem [#allocation2], %s540
          %542 = dma.done %s538, 256
        $region52: #{decoder_layer_forward.18} parent=43 // pred_fallthru
          _
      $region44: #{decoder_layer_forward.18} parent=5 // pred_fallthru
        _
    $region6: #{decoder_layer_forward.18} parent=1 // loop_footer
      %s18 = sadd.s32 1, %s14
    $region7: #{decoder_layer_forward.18} parent=1 // loop_footer_branch
      %13 = sbr.rel target = $region3
    $region8: #{decoder_layer_forward.18} parent=1 // loop_exit
      _
    %543 = vsyncpa [#allocation3], 1
    %s544 = scalar_lea.sflag [#allocation3], 1
    %545 = vsyncpa %s544, 1

</llo_original>
